<compile_context>
chip_gen: v6e
topology: v6e:2x2x1
jax: 0.10.0
libtpu: 0.0.40
codegen_flags: <defaults>
</compile_context>

<pallas_src>
import jax
import jax.numpy as jnp
from jax.experimental import pallas as pl
from jax.experimental.pallas import tpu as pltpu


# ----------------------------- device queries -------------------------------
def _num_tensorcores() -> int:
    """TensorCores a 'parallel' grid axis can be sharded across (best effort)."""
    try:
        kind = jax.devices()[0].device_kind.lower()
    except Exception:
        return 1
    # v7x: 2 TCs per chip; v4/v5p: megacore (2 fused TCs). v5e/v6e: 1 TC.
    if "v7" in kind or "v4" in kind or "v5p" in kind or "v5 p" in kind:
        return 2
    return 1


def _vmem_capacity_bytes() -> int:
    try:
        cap = getattr(pltpu.get_tpu_info(), "vmem_capacity_bytes", None)
        if cap:
            return int(cap)
    except Exception:
        pass
    return 64 << 20  # conservative default (v7x per-TensorCore VMEM)


# ----------------------------- tiling policy --------------------------------
def _pick_batch_block(B, S, H, itemsize, n_cores, budget_bytes):
    """Batch rows per grid step (see header for the per-generation policy)."""

    def fits(bt):
        io = 4 * bt * S * H * itemsize * 2            # q/k/v/out blocks, double-buffered
        weights = 3 * H * H * itemsize * 2            # projection weights (worst case 2 bufs)
        interm = bt * S * S * 4 + 4 * bt * S * H * 4  # f32 scores + proj/context values
        return io + weights + interm <= budget_bytes

    def largest_fitting(limit):
        best = 1
        for bt in range(1, limit + 1):
            if B % bt == 0 and fits(bt):
                best = bt
        return best

    if n_cores >= 2 and B % 2 == 0:
        bt_half = B // 2
        per_step_io = 4 * bt_half * S * H * itemsize
        min_work = 64 << 10  # below ~64 KiB/step the 2-way split is not worth it
        if fits(bt_half) and per_step_io >= min_work:
            return bt_half  # exactly two equal steps, one per TensorCore
    return largest_fitting(B)  # single-TC / tiny-work: as few steps as fit VMEM


# ------------------------------- kernel -------------------------------------
def _make_kernel(bt, s, h, flat_out):
    def kernel(q_ref, k_ref, v_ref, wqt_ref, wkt_ref, wvt_ref, o_ref):
        op_dtype = q_ref.dtype  # matmul-operand dtype (bf16 by default, or f32)

        # Projections: (bt*s, h) @ (h, h).  The (bt, s) axes were collapsed in
        # the wrapper, so the MXU sees bt*s rows and no in-kernel relayout of
        # the inputs is needed.  Weights arrive pre-transposed.
        q_proj = jnp.dot(q_ref[...], wqt_ref[...], preferred_element_type=jnp.float32)
        k_proj = jnp.dot(k_ref[...], wkt_ref[...], preferred_element_type=jnp.float32)
        v_proj = jnp.dot(v_ref[...], wvt_ref[...], preferred_element_type=jnp.float32)

        # Split the fused M axis back into (bt, s) for the batched attention
        # matmuls.  The lane (last) dim is untouched and s-row groups stay
        # sublane-aligned, so this is a layout-trivial value reshape.
        q_proj = q_proj.reshape(bt, s, h).astype(op_dtype)
        k_proj = k_proj.reshape(bt, s, h).astype(op_dtype)
        v_proj = v_proj.reshape(bt, s, h).astype(op_dtype)

        # Scores contract the hidden dim of both operands directly, matching
        # torch.matmul(Q, K.transpose(-2, -1)).  NOTE: no 1/sqrt(d) scaling --
        # the PyTorch module does not scale.  (If this einsum were to lower
        # with a per-batch k_proj transpose it is a single tiny XLU op at these
        # shapes; at larger S switch to per-batch pl.dot(..., trans_b=True).)
        scores = jnp.einsum("bqh,bkh->bqk", q_proj, k_proj,
                            preferred_element_type=jnp.float32)

        # Numerically stable softmax over the key axis, in f32.  approx
        # reciprocal runs on the otherwise-idle EUP slot.
        m = jnp.max(scores, axis=-1, keepdims=True)
        e = jnp.exp(scores - m)
        denom = jnp.sum(e, axis=-1, keepdims=True)
        attn = e * pl.reciprocal(denom, approx=True)

        # Context: attn @ v_proj (batched, contract the key axis).
        context = jnp.einsum("bqk,bkh->bqh", attn.astype(op_dtype), v_proj,
                             preferred_element_type=jnp.float32)

        if flat_out:
            # Lane-dense store: (bt, s*h) with s*h a multiple of 128 avoids the
            # masked 32-lane partial-store path.
            o_ref[...] = context.reshape(bt, s * h).astype(o_ref.dtype)
        else:
            # Safe fallback: merge only the leading dims (lane dim unchanged).
            o_ref[...] = context.reshape(bt * s, h).astype(o_ref.dtype)

    return kernel


# ------------------------------- wrapper -------------------------------------
_CONFIGS = (
    # (lane-dense flattened output, single-buffered weight blocks)
    (True, True),
    (True, False),
    (False, True),
    (False, False),
)
_WORKING_CONFIG = {}  # first config this jax/Mosaic version accepts, per shape


def cross_attention(query, key, value, wq, wk, wv, *, compute_dtype="auto",
                    batch_block=None):
    """Pallas forward of the PyTorch CrossAttention module.

    query/key/value: (B, S, H).  wq/wk/wv: (H, H) in PyTorch nn.Linear
    (out_features, in_features) layout.

    NOTE: like the PyTorch module, there is NO 1/sqrt(d) score scaling.

    compute_dtype: dtype of the matmul *operands*.  "auto" (default) uses
    bfloat16 when the inputs are float32 -- the MXU is bf16-native on v5e, v6e
    and v7x and this halves q/k/v/out DMA bytes.  Accumulation and the softmax
    are always f32; the output keeps the input dtype.
    """
    B, S, H = query.shape
    assert key.shape == (B, S, H) and value.shape == (B, S, H)
    assert wq.shape == (H, H) and wk.shape == (H, H) and wv.shape == (H, H)
    out_dtype = query.dtype

    if isinstance(compute_dtype, str) and compute_dtype == "auto":
        compute_dtype = jnp.bfloat16 if query.dtype == jnp.float32 else None
    if compute_dtype is not None:
        query, key, value = (x.astype(compute_dtype) for x in (query, key, value))
        wq, wk, wv = (w.astype(compute_dtype) for w in (wq, wk, wv))

    # One-time XLA-side transposes and 2-D collapse: the kernel never relayouts.
    wq_t, wk_t, wv_t = wq.T, wk.T, wv.T
    q2 = query.reshape(B * S, H)
    k2 = key.reshape(B * S, H)
    v2 = value.reshape(B * S, H)

    n_cores = _num_tensorcores()
    vmem_cap = _vmem_capacity_bytes()
    vmem_limit = max(16 << 20, min(int(vmem_cap * 0.75), vmem_cap - (4 << 20)))
    budget = int(vmem_limit * 0.8)

    itemsize = jnp.dtype(q2.dtype).itemsize
    bt = batch_block if batch_block is not None else _pick_batch_block(
        B, S, H, itemsize, n_cores, budget)
    assert B % bt == 0, "batch_block must divide the batch size"
    grid = (B // bt,)

    seq_spec = pl.BlockSpec((bt * S, H), lambda b: (b, 0))

    def run(flat_out, single_buffer_weights):
        if single_buffer_weights:
            # Weights are grid-invariant: one VMEM buffer, no wasted double buffer.
            w_spec = pl.BlockSpec((H, H), lambda b: (0, 0),
                                  pipeline_mode=pl.Buffered(buffer_count=1))
        else:
            w_spec = pl.BlockSpec((H, H), lambda b: (0, 0))

        if flat_out:
            out_shape = jax.ShapeDtypeStruct((B, S * H), out_dtype)
            out_spec = pl.BlockSpec((bt, S * H), lambda b: (b, 0))
        else:
            out_shape = jax.ShapeDtypeStruct((B * S, H), out_dtype)
            out_spec = pl.BlockSpec((bt * S, H), lambda b: (b, 0))

        out = pl.pallas_call(
            _make_kernel(bt, S, H, flat_out),
            out_shape=out_shape,
            grid_spec=pltpu.PrefetchScalarGridSpec(
                num_scalar_prefetch=0,
                grid=grid,
                in_specs=[seq_spec, seq_spec, seq_spec, w_spec, w_spec, w_spec],
                out_specs=out_spec,
            ),
            compiler_params=pltpu.CompilerParams(
                dimension_semantics=("parallel",),
                vmem_limit_bytes=int(vmem_limit),
            ),
        )(q2, k2, v2, wq_t, wk_t, wv_t)
        return out.reshape(B, S, H)

    cache_key = (B, S, H, bt, str(jnp.dtype(q2.dtype)), str(jnp.dtype(out_dtype)))
    start = _WORKING_CONFIG.get(cache_key, 0)
    last_err = None
    for idx in range(start, len(_CONFIGS)):
        flat_out, sb_w = _CONFIGS[idx]
        try:
            out = run(flat_out, sb_w)
            if cache_key not in _WORKING_CONFIG:
                jax.block_until_ready(out)  # surface lowering/runtime issues now
                _WORKING_CONFIG[cache_key] = idx
            return out
        except Exception as err:  # fall back to a layout this jax/Mosaic accepts
            last_err = err
    raise last_err


def cross_attention_ref(query, key, value, wq, wk, wv):
    """Pure-JAX f32 reference matching the PyTorch forward exactly."""
    q_proj = query @ wq.T
    k_proj = key @ wk.T
    v_proj = value @ wv.T
    scores = jnp.einsum("bqh,bkh->bqk", q_proj, k_proj)
    weights = jax.nn.softmax(scores, axis=-1)
    return jnp.einsum("bqk,bkh->bqh", weights, v_proj)


if __name__ == "__main__":
    B, S, H = 2, 8, 32

    key0 = jax.random.PRNGKey(0)
    kq, kk, kv, kwq, kwk, kwv = jax.random.split(key0, 6)

    query = jax.random.normal(kq, (B, S, H), dtype=jnp.float32)
    key_in = jax.random.normal(kk, (B, S, H), dtype=jnp.float32)
    value = jax.random.normal(kv, (B, S, H), dtype=jnp.float32)

    # Deterministic synthetic weights (PyTorch nn.Linear layout (out, in)),
    # scaled roughly like the default Kaiming-uniform bound 1/sqrt(H).
    bound = 1.0 / jnp.sqrt(jnp.float32(H))
    wq = jax.random.uniform(kwq, (H, H), jnp.float32, -bound, bound)
    wk = jax.random.uniform(kwk, (H, H), jnp.float32, -bound, bound)
    wv = jax.random.uniform(kwv, (H, H), jnp.float32, -bound, bound)

    ref = cross_attention_ref(query, key_in, value, wq, wk, wv)

    # Default path: bf16 matmul operands (bf16-native MXU on v5e/v6e/v7x) with
    # f32 accumulation + f32 softmax -> operand-rounding-level differences only.
    out = jax.block_until_ready(
        cross_attention(query, key_in, value, wq, wk, wv))
    assert out.shape == (B, S, H)
    assert jnp.allclose(out, ref, atol=1e-1, rtol=1e-1), "bf16-operand mismatch"

    # Exact-operand path: f32 matmuls; only the approx reciprocal (~2^-14 rel
    # error) and summation order differ from the reference.
    out_f32 = jax.block_until_ready(
        cross_attention(query, key_in, value, wq, wk, wv,
                        compute_dtype=jnp.float32))
    assert out_f32.shape == (B, S, H)
    assert jnp.allclose(out_f32, ref, atol=2e-3, rtol=2e-3), "f32 mismatch vs ref"

    print("KERNEL_OK")
</pallas_src>

<mosaic_0001>
module attributes {stable_mosaic.version = 11 : i64} {
  func.func @kernel(%arg0: i32, %arg1: memref<16x32xbf16, #tpu.memory_space<vmem>>, %arg2: memref<16x32xbf16, #tpu.memory_space<vmem>>, %arg3: memref<16x32xbf16, #tpu.memory_space<vmem>>, %arg4: memref<32x32xbf16, #tpu.memory_space<vmem>>, %arg5: memref<32x32xbf16, #tpu.memory_space<vmem>>, %arg6: memref<32x32xbf16, #tpu.memory_space<vmem>>, %arg7: memref<2x256xf32, #tpu.memory_space<vmem>>) attributes {dimension_semantics = [#tpu.dimension_semantics<parallel>], iteration_bounds = array<i64: 1>, scalar_prefetch = 0 : i64, scratch_operands = 0 : i64, tpu.core_type = #tpu.core_type<tc>, window_params = [{transform_indices = @transform_0, window_bounds = array<i64: 16, 32>}, {transform_indices = @transform_1, window_bounds = array<i64: 16, 32>}, {transform_indices = @transform_2, window_bounds = array<i64: 16, 32>}, {pipeline_mode = #tpu.pipeline_mode<synchronous>, transform_indices = @transform_3, window_bounds = array<i64: 32, 32>}, {pipeline_mode = #tpu.pipeline_mode<synchronous>, transform_indices = @transform_4, window_bounds = array<i64: 32, 32>}, {pipeline_mode = #tpu.pipeline_mode<synchronous>, transform_indices = @transform_5, window_bounds = array<i64: 32, 32>}, {transform_indices = @transform_6, window_bounds = array<i64: 2, 256>}]} {
    %c0 = arith.constant 0 : index
    %c0_0 = arith.constant 0 : index
    %0 = vector.load %arg1[%c0, %c0_0] : memref<16x32xbf16, #tpu.memory_space<vmem>>, vector<16x32xbf16>
    %c0_1 = arith.constant 0 : index
    %c0_2 = arith.constant 0 : index
    %1 = vector.load %arg4[%c0_1, %c0_2] : memref<32x32xbf16, #tpu.memory_space<vmem>>, vector<32x32xbf16>
    %cst = arith.constant dense<0.000000e+00> : vector<16x32xf32>
    %2 = tpu.matmul %0, %1, %cst {dimension_numbers = #tpu.dot_dimension_numbers<[1], [0], [0], [1], [0, 0, 1, 1], [], []>} : vector<16x32xbf16>, vector<32x32xbf16>, vector<16x32xf32> -> vector<16x32xf32>
    %c0_3 = arith.constant 0 : index
    %c0_4 = arith.constant 0 : index
    %3 = vector.load %arg2[%c0_3, %c0_4] : memref<16x32xbf16, #tpu.memory_space<vmem>>, vector<16x32xbf16>
    %c0_5 = arith.constant 0 : index
    %c0_6 = arith.constant 0 : index
    %4 = vector.load %arg5[%c0_5, %c0_6] : memref<32x32xbf16, #tpu.memory_space<vmem>>, vector<32x32xbf16>
    %cst_7 = arith.constant dense<0.000000e+00> : vector<16x32xf32>
    %5 = tpu.matmul %3, %4, %cst_7 {dimension_numbers = #tpu.dot_dimension_numbers<[1], [0], [0], [1], [0, 0, 1, 1], [], []>} : vector<16x32xbf16>, vector<32x32xbf16>, vector<16x32xf32> -> vector<16x32xf32>
    %c0_8 = arith.constant 0 : index
    %c0_9 = arith.constant 0 : index
    %6 = vector.load %arg3[%c0_8, %c0_9] : memref<16x32xbf16, #tpu.memory_space<vmem>>, vector<16x32xbf16>
    %c0_10 = arith.constant 0 : index
    %c0_11 = arith.constant 0 : index
    %7 = vector.load %arg6[%c0_10, %c0_11] : memref<32x32xbf16, #tpu.memory_space<vmem>>, vector<32x32xbf16>
    %cst_12 = arith.constant dense<0.000000e+00> : vector<16x32xf32>
    %8 = tpu.matmul %6, %7, %cst_12 {dimension_numbers = #tpu.dot_dimension_numbers<[1], [0], [0], [1], [0, 0, 1, 1], [], []>} : vector<16x32xbf16>, vector<32x32xbf16>, vector<16x32xf32> -> vector<16x32xf32>
    %9 = vector.shape_cast %2 : vector<16x32xf32> to vector<2x8x32xf32>
    %10 = arith.truncf %9 : vector<2x8x32xf32> to vector<2x8x32xbf16>
    %11 = vector.shape_cast %5 : vector<16x32xf32> to vector<2x8x32xf32>
    %12 = arith.truncf %11 : vector<2x8x32xf32> to vector<2x8x32xbf16>
    %13 = vector.shape_cast %8 : vector<16x32xf32> to vector<2x8x32xf32>
    %14 = arith.truncf %13 : vector<2x8x32xf32> to vector<2x8x32xbf16>
    "tpu.trace_start"() <{level = 10 : i32, message = "bqh,bkh->bqk"}> : () -> ()
    %cst_13 = arith.constant dense<0.000000e+00> : vector<2x8x8xf32>
    %15 = tpu.matmul %10, %12, %cst_13 {dimension_numbers = #tpu.dot_dimension_numbers<[2], [2], [1], [1], [0, 0, 0, 1, 1, 1], [0], [0]>} : vector<2x8x32xbf16>, vector<2x8x32xbf16>, vector<2x8x8xf32> -> vector<2x8x8xf32>
    "tpu.trace_stop"() : () -> ()
    %cst_14 = arith.constant dense<0xFF800000> : vector<2x8xf32>
    %16 = vector.multi_reduction <maximumf>, %15, %cst_14 [2] : vector<2x8x8xf32> to vector<2x8xf32>
    %17 = vector.shape_cast %16 : vector<2x8xf32> to vector<2x8x1xf32>
    %18 = vector.broadcast %17 : vector<2x8x1xf32> to vector<2x8x8xf32>
    %19 = arith.subf %15, %18 : vector<2x8x8xf32>
    %20 = math.exp %19 : vector<2x8x8xf32>
    %cst_15 = arith.constant dense<0.000000e+00> : vector<2x8xf32>
    %21 = vector.multi_reduction <add>, %20, %cst_15 [2] : vector<2x8x8xf32> to vector<2x8xf32>
    %22 = vector.shape_cast %21 : vector<2x8xf32> to vector<2x8x1xf32>
    %23 = tpu.reciprocal %22 {approx = true} : vector<2x8x1xf32> -> vector<2x8x1xf32>
    %24 = vector.broadcast %23 : vector<2x8x1xf32> to vector<2x8x8xf32>
    %25 = arith.mulf %20, %24 : vector<2x8x8xf32>
    %26 = arith.truncf %25 : vector<2x8x8xf32> to vector<2x8x8xbf16>
    "tpu.trace_start"() <{level = 10 : i32, message = "bqk,bkh->bqh"}> : () -> ()
    %cst_16 = arith.constant dense<0.000000e+00> : vector<2x8x32xf32>
    %27 = tpu.matmul %26, %14, %cst_16 {dimension_numbers = #tpu.dot_dimension_numbers<[2], [1], [1], [2], [0, 0, 0, 1, 1, 2], [0], [0]>} : vector<2x8x8xbf16>, vector<2x8x32xbf16>, vector<2x8x32xf32> -> vector<2x8x32xf32>
    "tpu.trace_stop"() : () -> ()
    %28 = vector.shape_cast %27 : vector<2x8x32xf32> to vector<2x256xf32>
    %c0_17 = arith.constant 0 : index
    %c0_18 = arith.constant 0 : index
    %29 = vector.load %arg7[%c0_17, %c0_18] : memref<2x256xf32, #tpu.memory_space<vmem>>, vector<2x256xf32>
    tpu.vector_store %arg7[%c0_17, %c0_18], %28 {strides = array<i32>} : memref<2x256xf32, #tpu.memory_space<vmem>>, vector<2x256xf32>,
    return
  }
  func.func @transform_0(%arg0: i32) -> (i32, i32) {
    %c0_i32 = arith.constant 0 : i32
    %c0_i32_0 = arith.constant 0 : i32
    return %arg0, %c0_i32 : i32, i32
  }
  func.func @transform_1(%arg0: i32) -> (i32, i32) {
    %c0_i32 = arith.constant 0 : i32
    %c0_i32_0 = arith.constant 0 : i32
    return %arg0, %c0_i32 : i32, i32
  }
  func.func @transform_2(%arg0: i32) -> (i32, i32) {
    %c0_i32 = arith.constant 0 : i32
    %c0_i32_0 = arith.constant 0 : i32
    return %arg0, %c0_i32 : i32, i32
  }
  func.func @transform_3(%arg0: i32) -> (i32, i32) {
    %c0_i32 = arith.constant 0 : i32
    %c0_i32_0 = arith.constant 0 : i32
    %c0_i32_1 = arith.constant 0 : i32
    return %c0_i32, %c0_i32_0 : i32, i32
  }
  func.func @transform_4(%arg0: i32) -> (i32, i32) {
    %c0_i32 = arith.constant 0 : i32
    %c0_i32_0 = arith.constant 0 : i32
    %c0_i32_1 = arith.constant 0 : i32
    return %c0_i32, %c0_i32_0 : i32, i32
  }
  func.func @transform_5(%arg0: i32) -> (i32, i32) {
    %c0_i32 = arith.constant 0 : i32
    %c0_i32_0 = arith.constant 0 : i32
    %c0_i32_1 = arith.constant 0 : i32
    return %c0_i32, %c0_i32_0 : i32, i32
  }
  func.func @transform_6(%arg0: i32) -> (i32, i32) {
    %c0_i32 = arith.constant 0 : i32
    %c0_i32_0 = arith.constant 0 : i32
    return %arg0, %c0_i32 : i32, i32
  }
}

module attributes {stable_mosaic.version = 11 : i64} {
  func.func @kernel(%arg0: i32, %arg1: memref<16x32xbf16, #tpu.memory_space<vmem>>, %arg2: memref<16x32xbf16, #tpu.memory_space<vmem>>, %arg3: memref<16x32xbf16, #tpu.memory_space<vmem>>, %arg4: memref<32x32xbf16, #tpu.memory_space<vmem>>, %arg5: memref<32x32xbf16, #tpu.memory_space<vmem>>, %arg6: memref<32x32xbf16, #tpu.memory_space<vmem>>, %arg7: memref<2x256xf32, #tpu.memory_space<vmem>>) attributes {dimension_semantics = [#tpu.dimension_semantics<parallel>], iteration_bounds = array<i64: 1>, scalar_prefetch = 0 : i64, scratch_operands = 0 : i64, tpu.core_type = #tpu.core_type<tc>, window_params = [{transform_indices = @transform_0, window_bounds = array<i64: 16, 32>}, {transform_indices = @transform_1, window_bounds = array<i64: 16, 32>}, {transform_indices = @transform_2, window_bounds = array<i64: 16, 32>}, {pipeline_mode = #tpu.pipeline_mode<synchronous>, transform_indices = @transform_3, window_bounds = array<i64: 32, 32>}, {pipeline_mode = #tpu.pipeline_mode<synchronous>, transform_indices = @transform_4, window_bounds = array<i64: 32, 32>}, {pipeline_mode = #tpu.pipeline_mode<synchronous>, transform_indices = @transform_5, window_bounds = array<i64: 32, 32>}, {transform_indices = @transform_6, window_bounds = array<i64: 2, 256>}]} {
    %c0 = arith.constant 0 : index
    %c0_0 = arith.constant 0 : index
    %0 = vector.load %arg1[%c0, %c0_0] : memref<16x32xbf16, #tpu.memory_space<vmem>>, vector<16x32xbf16>
    %c0_1 = arith.constant 0 : index
    %c0_2 = arith.constant 0 : index
    %1 = vector.load %arg4[%c0_1, %c0_2] : memref<32x32xbf16, #tpu.memory_space<vmem>>, vector<32x32xbf16>
    %cst = arith.constant dense<0.000000e+00> : vector<16x32xf32>
    %2 = tpu.matmul %0, %1, %cst {dimension_numbers = #tpu.dot_dimension_numbers<[1], [0], [0], [1], [0, 0, 1, 1], [], []>} : vector<16x32xbf16>, vector<32x32xbf16>, vector<16x32xf32> -> vector<16x32xf32>
    %c0_3 = arith.constant 0 : index
    %c0_4 = arith.constant 0 : index
    %3 = vector.load %arg2[%c0_3, %c0_4] : memref<16x32xbf16, #tpu.memory_space<vmem>>, vector<16x32xbf16>
    %c0_5 = arith.constant 0 : index
    %c0_6 = arith.constant 0 : index
    %4 = vector.load %arg5[%c0_5, %c0_6] : memref<32x32xbf16, #tpu.memory_space<vmem>>, vector<32x32xbf16>
    %cst_7 = arith.constant dense<0.000000e+00> : vector<16x32xf32>
    %5 = tpu.matmul %3, %4, %cst_7 {dimension_numbers = #tpu.dot_dimension_numbers<[1], [0], [0], [1], [0, 0, 1, 1], [], []>} : vector<16x32xbf16>, vector<32x32xbf16>, vector<16x32xf32> -> vector<16x32xf32>
    %c0_8 = arith.constant 0 : index
    %c0_9 = arith.constant 0 : index
    %6 = vector.load %arg3[%c0_8, %c0_9] : memref<16x32xbf16, #tpu.memory_space<vmem>>, vector<16x32xbf16>
    %c0_10 = arith.constant 0 : index
    %c0_11 = arith.constant 0 : index
    %7 = vector.load %arg6[%c0_10, %c0_11] : memref<32x32xbf16, #tpu.memory_space<vmem>>, vector<32x32xbf16>
    %cst_12 = arith.constant dense<0.000000e+00> : vector<16x32xf32>
    %8 = tpu.matmul %6, %7, %cst_12 {dimension_numbers = #tpu.dot_dimension_numbers<[1], [0], [0], [1], [0, 0, 1, 1], [], []>} : vector<16x32xbf16>, vector<32x32xbf16>, vector<16x32xf32> -> vector<16x32xf32>
    %9 = vector.shape_cast %2 : vector<16x32xf32> to vector<2x8x32xf32>
    %10 = arith.truncf %9 : vector<2x8x32xf32> to vector<2x8x32xbf16>
    %11 = vector.shape_cast %5 : vector<16x32xf32> to vector<2x8x32xf32>
    %12 = arith.truncf %11 : vector<2x8x32xf32> to vector<2x8x32xbf16>
    %13 = vector.shape_cast %8 : vector<16x32xf32> to vector<2x8x32xf32>
    %14 = arith.truncf %13 : vector<2x8x32xf32> to vector<2x8x32xbf16>
    "tpu.trace_start"() <{level = 10 : i32, message = "bqh,bkh->bqk"}> : () -> ()
    %cst_13 = arith.constant dense<0.000000e+00> : vector<2x8x8xf32>
    %15 = tpu.matmul %10, %12, %cst_13 {dimension_numbers = #tpu.dot_dimension_numbers<[2], [2], [1], [1], [0, 0, 0, 1, 1, 1], [0], [0]>} : vector<2x8x32xbf16>, vector<2x8x32xbf16>, vector<2x8x8xf32> -> vector<2x8x8xf32>
    "tpu.trace_stop"() : () -> ()
    %cst_14 = arith.constant dense<0xFF800000> : vector<2x8xf32>
    %16 = vector.multi_reduction <maximumf>, %15, %cst_14 [2] : vector<2x8x8xf32> to vector<2x8xf32>
    %17 = vector.shape_cast %16 : vector<2x8xf32> to vector<2x8x1xf32>
    %18 = vector.broadcast %17 : vector<2x8x1xf32> to vector<2x8x8xf32>
    %19 = arith.subf %15, %18 : vector<2x8x8xf32>
    %20 = math.exp %19 : vector<2x8x8xf32>
    %cst_15 = arith.constant dense<0.000000e+00> : vector<2x8xf32>
    %21 = vector.multi_reduction <add>, %20, %cst_15 [2] : vector<2x8x8xf32> to vector<2x8xf32>
    %22 = vector.shape_cast %21 : vector<2x8xf32> to vector<2x8x1xf32>
    %23 = tpu.reciprocal %22 {approx = true} : vector<2x8x1xf32> -> vector<2x8x1xf32>
    %24 = vector.broadcast %23 : vector<2x8x1xf32> to vector<2x8x8xf32>
    %25 = arith.mulf %20, %24 : vector<2x8x8xf32>
    %26 = arith.truncf %25 : vector<2x8x8xf32> to vector<2x8x8xbf16>
    "tpu.trace_start"() <{level = 10 : i32, message = "bqk,bkh->bqh"}> : () -> ()
    %cst_16 = arith.constant dense<0.000000e+00> : vector<2x8x32xf32>
    %27 = tpu.matmul %26, %14, %cst_16 {dimension_numbers = #tpu.dot_dimension_numbers<[2], [1], [1], [2], [0, 0, 0, 1, 1, 2], [0], [0]>} : vector<2x8x8xbf16>, vector<2x8x32xbf16>, vector<2x8x32xf32> -> vector<2x8x32xf32>
    "tpu.trace_stop"() : () -> ()
    %28 = vector.shape_cast %27 : vector<2x8x32xf32> to vector<2x256xf32>
    %c0_17 = arith.constant 0 : index
    %c0_18 = arith.constant 0 : index
    %29 = vector.load %arg7[%c0_17, %c0_18] : memref<2x256xf32, #tpu.memory_space<vmem>>, vector<2x256xf32>
    tpu.vector_store %arg7[%c0_17, %c0_18], %28 {strides = array<i32>} : memref<2x256xf32, #tpu.memory_space<vmem>>, vector<2x256xf32>,
    return
  }
  func.func @transform_0(%arg0: i32) -> (i32, i32) {
    %c0_i32 = arith.constant 0 : i32
    %c0_i32_0 = arith.constant 0 : i32
    return %arg0, %c0_i32 : i32, i32
  }
  func.func @transform_1(%arg0: i32) -> (i32, i32) {
    %c0_i32 = arith.constant 0 : i32
    %c0_i32_0 = arith.constant 0 : i32
    return %arg0, %c0_i32 : i32, i32
  }
  func.func @transform_2(%arg0: i32) -> (i32, i32) {
    %c0_i32 = arith.constant 0 : i32
    %c0_i32_0 = arith.constant 0 : i32
    return %arg0, %c0_i32 : i32, i32
  }
  func.func @transform_3(%arg0: i32) -> (i32, i32) {
    %c0_i32 = arith.constant 0 : i32
    %c0_i32_0 = arith.constant 0 : i32
    %c0_i32_1 = arith.constant 0 : i32
    return %c0_i32, %c0_i32_0 : i32, i32
  }
  func.func @transform_4(%arg0: i32) -> (i32, i32) {
    %c0_i32 = arith.constant 0 : i32
    %c0_i32_0 = arith.constant 0 : i32
    %c0_i32_1 = arith.constant 0 : i32
    return %c0_i32, %c0_i32_0 : i32, i32
  }
  func.func @transform_5(%arg0: i32) -> (i32, i32) {
    %c0_i32 = arith.constant 0 : i32
    %c0_i32_0 = arith.constant 0 : i32
    %c0_i32_1 = arith.constant 0 : i32
    return %c0_i32, %c0_i32_0 : i32, i32
  }
  func.func @transform_6(%arg0: i32) -> (i32, i32) {
    %c0_i32 = arith.constant 0 : i32
    %c0_i32_0 = arith.constant 0 : i32
    return %arg0, %c0_i32 : i32, i32
  }
}

module attributes {stable_mosaic.version = 11 : i64} {
  func.func @kernel(%arg0: i32, %arg1: memref<16x32xbf16, #tpu.memory_space<vmem>>, %arg2: memref<16x32xbf16, #tpu.memory_space<vmem>>, %arg3: memref<16x32xbf16, #tpu.memory_space<vmem>>, %arg4: memref<32x32xbf16, #tpu.memory_space<vmem>>, %arg5: memref<32x32xbf16, #tpu.memory_space<vmem>>, %arg6: memref<32x32xbf16, #tpu.memory_space<vmem>>, %arg7: memref<16x32xf32, #tpu.memory_space<vmem>>) attributes {dimension_semantics = [#tpu.dimension_semantics<parallel>], iteration_bounds = array<i64: 1>, scalar_prefetch = 0 : i64, scratch_operands = 0 : i64, tpu.core_type = #tpu.core_type<tc>, window_params = [{transform_indices = @transform_0, window_bounds = array<i64: 16, 32>}, {transform_indices = @transform_1, window_bounds = array<i64: 16, 32>}, {transform_indices = @transform_2, window_bounds = array<i64: 16, 32>}, {pipeline_mode = #tpu.pipeline_mode<synchronous>, transform_indices = @transform_3, window_bounds = array<i64: 32, 32>}, {pipeline_mode = #tpu.pipeline_mode<synchronous>, transform_indices = @transform_4, window_bounds = array<i64: 32, 32>}, {pipeline_mode = #tpu.pipeline_mode<synchronous>, transform_indices = @transform_5, window_bounds = array<i64: 32, 32>}, {transform_indices = @transform_6, window_bounds = array<i64: 16, 32>}]} {
    %c0 = arith.constant 0 : index
    %c0_0 = arith.constant 0 : index
    %0 = vector.load %arg1[%c0, %c0_0] : memref<16x32xbf16, #tpu.memory_space<vmem>>, vector<16x32xbf16>
    %c0_1 = arith.constant 0 : index
    %c0_2 = arith.constant 0 : index
    %1 = vector.load %arg4[%c0_1, %c0_2] : memref<32x32xbf16, #tpu.memory_space<vmem>>, vector<32x32xbf16>
    %cst = arith.constant dense<0.000000e+00> : vector<16x32xf32>
    %2 = tpu.matmul %0, %1, %cst {dimension_numbers = #tpu.dot_dimension_numbers<[1], [0], [0], [1], [0, 0, 1, 1], [], []>} : vector<16x32xbf16>, vector<32x32xbf16>, vector<16x32xf32> -> vector<16x32xf32>
    %c0_3 = arith.constant 0 : index
    %c0_4 = arith.constant 0 : index
    %3 = vector.load %arg2[%c0_3, %c0_4] : memref<16x32xbf16, #tpu.memory_space<vmem>>, vector<16x32xbf16>
    %c0_5 = arith.constant 0 : index
    %c0_6 = arith.constant 0 : index
    %4 = vector.load %arg5[%c0_5, %c0_6] : memref<32x32xbf16, #tpu.memory_space<vmem>>, vector<32x32xbf16>
    %cst_7 = arith.constant dense<0.000000e+00> : vector<16x32xf32>
    %5 = tpu.matmul %3, %4, %cst_7 {dimension_numbers = #tpu.dot_dimension_numbers<[1], [0], [0], [1], [0, 0, 1, 1], [], []>} : vector<16x32xbf16>, vector<32x32xbf16>, vector<16x32xf32> -> vector<16x32xf32>
    %c0_8 = arith.constant 0 : index
    %c0_9 = arith.constant 0 : index
    %6 = vector.load %arg3[%c0_8, %c0_9] : memref<16x32xbf16, #tpu.memory_space<vmem>>, vector<16x32xbf16>
    %c0_10 = arith.constant 0 : index
    %c0_11 = arith.constant 0 : index
    %7 = vector.load %arg6[%c0_10, %c0_11] : memref<32x32xbf16, #tpu.memory_space<vmem>>, vector<32x32xbf16>
    %cst_12 = arith.constant dense<0.000000e+00> : vector<16x32xf32>
    %8 = tpu.matmul %6, %7, %cst_12 {dimension_numbers = #tpu.dot_dimension_numbers<[1], [0], [0], [1], [0, 0, 1, 1], [], []>} : vector<16x32xbf16>, vector<32x32xbf16>, vector<16x32xf32> -> vector<16x32xf32>
    %9 = vector.shape_cast %2 : vector<16x32xf32> to vector<2x8x32xf32>
    %10 = arith.truncf %9 : vector<2x8x32xf32> to vector<2x8x32xbf16>
    %11 = vector.shape_cast %5 : vector<16x32xf32> to vector<2x8x32xf32>
    %12 = arith.truncf %11 : vector<2x8x32xf32> to vector<2x8x32xbf16>
    %13 = vector.shape_cast %8 : vector<16x32xf32> to vector<2x8x32xf32>
    %14 = arith.truncf %13 : vector<2x8x32xf32> to vector<2x8x32xbf16>
    "tpu.trace_start"() <{level = 10 : i32, message = "bqh,bkh->bqk"}> : () -> ()
    %cst_13 = arith.constant dense<0.000000e+00> : vector<2x8x8xf32>
    %15 = tpu.matmul %10, %12, %cst_13 {dimension_numbers = #tpu.dot_dimension_numbers<[2], [2], [1], [1], [0, 0, 0, 1, 1, 1], [0], [0]>} : vector<2x8x32xbf16>, vector<2x8x32xbf16>, vector<2x8x8xf32> -> vector<2x8x8xf32>
    "tpu.trace_stop"() : () -> ()
    %cst_14 = arith.constant dense<0xFF800000> : vector<2x8xf32>
    %16 = vector.multi_reduction <maximumf>, %15, %cst_14 [2] : vector<2x8x8xf32> to vector<2x8xf32>
    %17 = vector.shape_cast %16 : vector<2x8xf32> to vector<2x8x1xf32>
    %18 = vector.broadcast %17 : vector<2x8x1xf32> to vector<2x8x8xf32>
    %19 = arith.subf %15, %18 : vector<2x8x8xf32>
    %20 = math.exp %19 : vector<2x8x8xf32>
    %cst_15 = arith.constant dense<0.000000e+00> : vector<2x8xf32>
    %21 = vector.multi_reduction <add>, %20, %cst_15 [2] : vector<2x8x8xf32> to vector<2x8xf32>
    %22 = vector.shape_cast %21 : vector<2x8xf32> to vector<2x8x1xf32>
    %23 = tpu.reciprocal %22 {approx = true} : vector<2x8x1xf32> -> vector<2x8x1xf32>
    %24 = vector.broadcast %23 : vector<2x8x1xf32> to vector<2x8x8xf32>
    %25 = arith.mulf %20, %24 : vector<2x8x8xf32>
    %26 = arith.truncf %25 : vector<2x8x8xf32> to vector<2x8x8xbf16>
    "tpu.trace_start"() <{level = 10 : i32, message = "bqk,bkh->bqh"}> : () -> ()
    %cst_16 = arith.constant dense<0.000000e+00> : vector<2x8x32xf32>
    %27 = tpu.matmul %26, %14, %cst_16 {dimension_numbers = #tpu.dot_dimension_numbers<[2], [1], [1], [2], [0, 0, 0, 1, 1, 2], [0], [0]>} : vector<2x8x8xbf16>, vector<2x8x32xbf16>, vector<2x8x32xf32> -> vector<2x8x32xf32>
    "tpu.trace_stop"() : () -> ()
    %28 = vector.shape_cast %27 : vector<2x8x32xf32> to vector<16x32xf32>
    %c0_17 = arith.constant 0 : index
    %c0_18 = arith.constant 0 : index
    %29 = vector.load %arg7[%c0_17, %c0_18] : memref<16x32xf32, #tpu.memory_space<vmem>>, vector<16x32xf32>
    tpu.vector_store %arg7[%c0_17, %c0_18], %28 {strides = array<i32>} : memref<16x32xf32, #tpu.memory_space<vmem>>, vector<16x32xf32>,
    return
  }
  func.func @transform_0(%arg0: i32) -> (i32, i32) {
    %c0_i32 = arith.constant 0 : i32
    %c0_i32_0 = arith.constant 0 : i32
    return %arg0, %c0_i32 : i32, i32
  }
  func.func @transform_1(%arg0: i32) -> (i32, i32) {
    %c0_i32 = arith.constant 0 : i32
    %c0_i32_0 = arith.constant 0 : i32
    return %arg0, %c0_i32 : i32, i32
  }
  func.func @transform_2(%arg0: i32) -> (i32, i32) {
    %c0_i32 = arith.constant 0 : i32
    %c0_i32_0 = arith.constant 0 : i32
    return %arg0, %c0_i32 : i32, i32
  }
  func.func @transform_3(%arg0: i32) -> (i32, i32) {
    %c0_i32 = arith.constant 0 : i32
    %c0_i32_0 = arith.constant 0 : i32
    %c0_i32_1 = arith.constant 0 : i32
    return %c0_i32, %c0_i32_0 : i32, i32
  }
  func.func @transform_4(%arg0: i32) -> (i32, i32) {
    %c0_i32 = arith.constant 0 : i32
    %c0_i32_0 = arith.constant 0 : i32
    %c0_i32_1 = arith.constant 0 : i32
    return %c0_i32, %c0_i32_0 : i32, i32
  }
  func.func @transform_5(%arg0: i32) -> (i32, i32) {
    %c0_i32 = arith.constant 0 : i32
    %c0_i32_0 = arith.constant 0 : i32
    %c0_i32_1 = arith.constant 0 : i32
    return %c0_i32, %c0_i32_0 : i32, i32
  }
  func.func @transform_6(%arg0: i32) -> (i32, i32) {
    %c0_i32 = arith.constant 0 : i32
    %c0_i32_0 = arith.constant 0 : i32
    return %arg0, %c0_i32 : i32, i32
  }
}

module attributes {stable_mosaic.version = 11 : i64} {
  func.func @kernel(%arg0: i32, %arg1: memref<16x32xbf16, #tpu.memory_space<vmem>>, %arg2: memref<16x32xbf16, #tpu.memory_space<vmem>>, %arg3: memref<16x32xbf16, #tpu.memory_space<vmem>>, %arg4: memref<32x32xbf16, #tpu.memory_space<vmem>>, %arg5: memref<32x32xbf16, #tpu.memory_space<vmem>>, %arg6: memref<32x32xbf16, #tpu.memory_space<vmem>>, %arg7: memref<16x32xf32, #tpu.memory_space<vmem>>) attributes {dimension_semantics = [#tpu.dimension_semantics<parallel>], iteration_bounds = array<i64: 1>, scalar_prefetch = 0 : i64, scratch_operands = 0 : i64, tpu.core_type = #tpu.core_type<tc>, window_params = [{transform_indices = @transform_0, window_bounds = array<i64: 16, 32>}, {transform_indices = @transform_1, window_bounds = array<i64: 16, 32>}, {transform_indices = @transform_2, window_bounds = array<i64: 16, 32>}, {pipeline_mode = #tpu.pipeline_mode<synchronous>, transform_indices = @transform_3, window_bounds = array<i64: 32, 32>}, {pipeline_mode = #tpu.pipeline_mode<synchronous>, transform_indices = @transform_4, window_bounds = array<i64: 32, 32>}, {pipeline_mode = #tpu.pipeline_mode<synchronous>, transform_indices = @transform_5, window_bounds = array<i64: 32, 32>}, {transform_indices = @transform_6, window_bounds = array<i64: 16, 32>}]} {
    %c0 = arith.constant 0 : index
    %c0_0 = arith.constant 0 : index
    %0 = vector.load %arg1[%c0, %c0_0] : memref<16x32xbf16, #tpu.memory_space<vmem>>, vector<16x32xbf16>
    %c0_1 = arith.constant 0 : index
    %c0_2 = arith.constant 0 : index
    %1 = vector.load %arg4[%c0_1, %c0_2] : memref<32x32xbf16, #tpu.memory_space<vmem>>, vector<32x32xbf16>
    %cst = arith.constant dense<0.000000e+00> : vector<16x32xf32>
    %2 = tpu.matmul %0, %1, %cst {dimension_numbers = #tpu.dot_dimension_numbers<[1], [0], [0], [1], [0, 0, 1, 1], [], []>} : vector<16x32xbf16>, vector<32x32xbf16>, vector<16x32xf32> -> vector<16x32xf32>
    %c0_3 = arith.constant 0 : index
    %c0_4 = arith.constant 0 : index
    %3 = vector.load %arg2[%c0_3, %c0_4] : memref<16x32xbf16, #tpu.memory_space<vmem>>, vector<16x32xbf16>
    %c0_5 = arith.constant 0 : index
    %c0_6 = arith.constant 0 : index
    %4 = vector.load %arg5[%c0_5, %c0_6] : memref<32x32xbf16, #tpu.memory_space<vmem>>, vector<32x32xbf16>
    %cst_7 = arith.constant dense<0.000000e+00> : vector<16x32xf32>
    %5 = tpu.matmul %3, %4, %cst_7 {dimension_numbers = #tpu.dot_dimension_numbers<[1], [0], [0], [1], [0, 0, 1, 1], [], []>} : vector<16x32xbf16>, vector<32x32xbf16>, vector<16x32xf32> -> vector<16x32xf32>
    %c0_8 = arith.constant 0 : index
    %c0_9 = arith.constant 0 : index
    %6 = vector.load %arg3[%c0_8, %c0_9] : memref<16x32xbf16, #tpu.memory_space<vmem>>, vector<16x32xbf16>
    %c0_10 = arith.constant 0 : index
    %c0_11 = arith.constant 0 : index
    %7 = vector.load %arg6[%c0_10, %c0_11] : memref<32x32xbf16, #tpu.memory_space<vmem>>, vector<32x32xbf16>
    %cst_12 = arith.constant dense<0.000000e+00> : vector<16x32xf32>
    %8 = tpu.matmul %6, %7, %cst_12 {dimension_numbers = #tpu.dot_dimension_numbers<[1], [0], [0], [1], [0, 0, 1, 1], [], []>} : vector<16x32xbf16>, vector<32x32xbf16>, vector<16x32xf32> -> vector<16x32xf32>
    %9 = vector.shape_cast %2 : vector<16x32xf32> to vector<2x8x32xf32>
    %10 = arith.truncf %9 : vector<2x8x32xf32> to vector<2x8x32xbf16>
    %11 = vector.shape_cast %5 : vector<16x32xf32> to vector<2x8x32xf32>
    %12 = arith.truncf %11 : vector<2x8x32xf32> to vector<2x8x32xbf16>
    %13 = vector.shape_cast %8 : vector<16x32xf32> to vector<2x8x32xf32>
    %14 = arith.truncf %13 : vector<2x8x32xf32> to vector<2x8x32xbf16>
    "tpu.trace_start"() <{level = 10 : i32, message = "bqh,bkh->bqk"}> : () -> ()
    %cst_13 = arith.constant dense<0.000000e+00> : vector<2x8x8xf32>
    %15 = tpu.matmul %10, %12, %cst_13 {dimension_numbers = #tpu.dot_dimension_numbers<[2], [2], [1], [1], [0, 0, 0, 1, 1, 1], [0], [0]>} : vector<2x8x32xbf16>, vector<2x8x32xbf16>, vector<2x8x8xf32> -> vector<2x8x8xf32>
    "tpu.trace_stop"() : () -> ()
    %cst_14 = arith.constant dense<0xFF800000> : vector<2x8xf32>
    %16 = vector.multi_reduction <maximumf>, %15, %cst_14 [2] : vector<2x8x8xf32> to vector<2x8xf32>
    %17 = vector.shape_cast %16 : vector<2x8xf32> to vector<2x8x1xf32>
    %18 = vector.broadcast %17 : vector<2x8x1xf32> to vector<2x8x8xf32>
    %19 = arith.subf %15, %18 : vector<2x8x8xf32>
    %20 = math.exp %19 : vector<2x8x8xf32>
    %cst_15 = arith.constant dense<0.000000e+00> : vector<2x8xf32>
    %21 = vector.multi_reduction <add>, %20, %cst_15 [2] : vector<2x8x8xf32> to vector<2x8xf32>
    %22 = vector.shape_cast %21 : vector<2x8xf32> to vector<2x8x1xf32>
    %23 = tpu.reciprocal %22 {approx = true} : vector<2x8x1xf32> -> vector<2x8x1xf32>
    %24 = vector.broadcast %23 : vector<2x8x1xf32> to vector<2x8x8xf32>
    %25 = arith.mulf %20, %24 : vector<2x8x8xf32>
    %26 = arith.truncf %25 : vector<2x8x8xf32> to vector<2x8x8xbf16>
    "tpu.trace_start"() <{level = 10 : i32, message = "bqk,bkh->bqh"}> : () -> ()
    %cst_16 = arith.constant dense<0.000000e+00> : vector<2x8x32xf32>
    %27 = tpu.matmul %26, %14, %cst_16 {dimension_numbers = #tpu.dot_dimension_numbers<[2], [1], [1], [2], [0, 0, 0, 1, 1, 2], [0], [0]>} : vector<2x8x8xbf16>, vector<2x8x32xbf16>, vector<2x8x32xf32> -> vector<2x8x32xf32>
    "tpu.trace_stop"() : () -> ()
    %28 = vector.shape_cast %27 : vector<2x8x32xf32> to vector<16x32xf32>
    %c0_17 = arith.constant 0 : index
    %c0_18 = arith.constant 0 : index
    %29 = vector.load %arg7[%c0_17, %c0_18] : memref<16x32xf32, #tpu.memory_space<vmem>>, vector<16x32xf32>
    tpu.vector_store %arg7[%c0_17, %c0_18], %28 {strides = array<i32>} : memref<16x32xf32, #tpu.memory_space<vmem>>, vector<16x32xf32>,
    return
  }
  func.func @transform_0(%arg0: i32) -> (i32, i32) {
    %c0_i32 = arith.constant 0 : i32
    %c0_i32_0 = arith.constant 0 : i32
    return %arg0, %c0_i32 : i32, i32
  }
  func.func @transform_1(%arg0: i32) -> (i32, i32) {
    %c0_i32 = arith.constant 0 : i32
    %c0_i32_0 = arith.constant 0 : i32
    return %arg0, %c0_i32 : i32, i32
  }
  func.func @transform_2(%arg0: i32) -> (i32, i32) {
    %c0_i32 = arith.constant 0 : i32
    %c0_i32_0 = arith.constant 0 : i32
    return %arg0, %c0_i32 : i32, i32
  }
  func.func @transform_3(%arg0: i32) -> (i32, i32) {
    %c0_i32 = arith.constant 0 : i32
    %c0_i32_0 = arith.constant 0 : i32
    %c0_i32_1 = arith.constant 0 : i32
    return %c0_i32, %c0_i32_0 : i32, i32
  }
  func.func @transform_4(%arg0: i32) -> (i32, i32) {
    %c0_i32 = arith.constant 0 : i32
    %c0_i32_0 = arith.constant 0 : i32
    %c0_i32_1 = arith.constant 0 : i32
    return %c0_i32, %c0_i32_0 : i32, i32
  }
  func.func @transform_5(%arg0: i32) -> (i32, i32) {
    %c0_i32 = arith.constant 0 : i32
    %c0_i32_0 = arith.constant 0 : i32
    %c0_i32_1 = arith.constant 0 : i32
    return %c0_i32, %c0_i32_0 : i32, i32
  }
  func.func @transform_6(%arg0: i32) -> (i32, i32) {
    %c0_i32 = arith.constant 0 : i32
    %c0_i32_0 = arith.constant 0 : i32
    return %arg0, %c0_i32 : i32, i32
  }
}

</mosaic_0001>

<llo_original>
// kernel: tpu_custom_call.1
$region0: #{tpu_custom_call.1}
  #allocation0 [shape = 'u32[]', space=smem, size = 0x4, offset = 0x4, fixed_abs, tag = 'smem constant byte address 0x4 - core index']
  #allocation1 [shape = 'u32[144,128]{1,0:T(1,128)}', space=vmem, size = 0x12000, scoped, tag = 'internal scratch']
  %s0 = inlined_call_operand.hbm [shape: bf16[16,32], index: 0, kind: input, shape index: {}]
  %s1 = inlined_call_operand.hbm [shape: bf16[16,32], index: 1, kind: input, shape index: {}]
  %s2 = inlined_call_operand.hbm [shape: bf16[16,32], index: 2, kind: input, shape index: {}]
  %s3 = inlined_call_operand.hbm [shape: bf16[32,32], index: 3, kind: input, shape index: {}]
  %s4 = inlined_call_operand.hbm [shape: bf16[32,32], index: 4, kind: input, shape index: {}]
  %s5 = inlined_call_operand.hbm [shape: bf16[32,32], index: 5, kind: input, shape index: {}]
  %s6 = inlined_call_operand.hbm [shape: f32[2,256], index: 6, kind: output, shape index: {}]
  %s7 = sld [smem:[#allocation0]]
  $region58: #{tpu_custom_call.1} parent=0
    _
  %s9 = ssub.s32 1, %s7
  %s10 = scalar_select 0, %s9, %s7
  $region1: #{tpu_custom_call.1} parent=0
    #allocation2 [shape = 'u8[4096]{0}', space=vmem, size = 0x1000, scoped, tag = 'input window, operand 0, single buffered']
    #allocation3 [shape = 's32[1]{0}', space=sflag, size = 0x4, scoped, tag = 'scoped memory for tpu_custom_call.1']
    #allocation4 [shape = 's32[1]{0}', space=sflag, size = 0x4, scoped, tag = 'scoped memory for tpu_custom_call.1']
    #allocation5 [shape = 'u8[4096]{0}', space=vmem, size = 0x1000, scoped, tag = 'input window, operand 1, single buffered']
    #allocation6 [shape = 's32[1]{0}', space=sflag, size = 0x4, scoped, tag = 'scoped memory for tpu_custom_call.1']
    #allocation7 [shape = 'u8[4096]{0}', space=vmem, size = 0x1000, scoped, tag = 'input window, operand 2, single buffered']
    #allocation8 [shape = 'u8[8192]{0}', space=vmem, size = 0x2000, scoped, tag = 'input window, operand 3, single buffered']
    #allocation9 [shape = 's32[1]{0}', space=sflag, size = 0x4, scoped, tag = 'scoped memory for tpu_custom_call.1']
    #allocation10 [shape = 'u8[8192]{0}', space=vmem, size = 0x2000, scoped, tag = 'input window, operand 4, single buffered']
    #allocation11 [shape = 'u8[8192]{0}', space=vmem, size = 0x2000, scoped, tag = 'input window, operand 5, single buffered']
    #allocation12 [shape = 's32[1]{0}', space=sflag, size = 0x4, scoped, tag = 'scoped memory for tpu_custom_call.1']
    #allocation13 [shape = 'u8[2048]{0}', space=vmem, size = 0x800, scoped, tag = 'output window, operand 0, single buffered']
    %11 = vsyncpa [#allocation3], 0
    %12 = vsyncpa [#allocation6], 0
    %13 = vsyncpa [#allocation9], 0
    %14 = vsyncpa [#allocation12], 0
    %15 = vsyncpa [#allocation4], 0
    // Predicated region
    $region2: #{tpu_custom_call.1} parent=1 // pred_check
      _
    $region3: #{tpu_custom_call.1} parent=1 // pred_check_branch
      %17 = sbr.rel (0) target = $region5
    $region4: #{tpu_custom_call.1} parent=1 // pred_region
      %s19 = ssub.s32 128, 128
      %20 = vsyncadd [#allocation3], %s19
      %s21 = sshll.u32 [#allocation2], 4
      %s22 = int_to_ptr.vmem [resolvable:$true] %s21
      %27 = dma.hbm_to_vmem [thread:$0]  %s0, 128, %s22, [#allocation3], 64, 64, 4
    $region5: #{tpu_custom_call.1} parent=1 // pred_fallthru
      _
    // Predicated region
    $region6: #{tpu_custom_call.1} parent=1 // pred_check
      _
    $region7: #{tpu_custom_call.1} parent=1 // pred_check_branch
      %29 = sbr.rel (0) target = $region9
    $region8: #{tpu_custom_call.1} parent=1 // pred_region
      %s31 = ssub.s32 128, 128
      %32 = vsyncadd [#allocation6], %s31
      %s33 = sshll.u32 [#allocation5], 4
      %s34 = int_to_ptr.vmem [resolvable:$true] %s33
      %39 = dma.hbm_to_vmem [thread:$0]  %s1, 128, %s34, [#allocation6], 64, 64, 4
    $region9: #{tpu_custom_call.1} parent=1 // pred_fallthru
      _
    // Predicated region
    $region10: #{tpu_custom_call.1} parent=1 // pred_check
      _
    $region11: #{tpu_custom_call.1} parent=1 // pred_check_branch
      %41 = sbr.rel (0) target = $region13
    $region12: #{tpu_custom_call.1} parent=1 // pred_region
      %s43 = ssub.s32 128, 128
      %44 = vsyncadd [#allocation6], %s43
      %s45 = sshll.u32 [#allocation7], 4
      %s46 = int_to_ptr.vmem [resolvable:$true] %s45
      %51 = dma.hbm_to_vmem [thread:$0]  %s2, 128, %s46, [#allocation6], 64, 64, 4
    $region13: #{tpu_custom_call.1} parent=1 // pred_fallthru
      _
    // Predicated region
    $region14: #{tpu_custom_call.1} parent=1 // pred_check
      _
    $region15: #{tpu_custom_call.1} parent=1 // pred_check_branch
      %53 = sbr.rel (0) target = $region17
    $region16: #{tpu_custom_call.1} parent=1 // pred_region
      %s55 = ssub.s32 256, 256
      %56 = vsyncadd [#allocation9], %s55
      %s57 = sshll.u32 [#allocation8], 4
      %s58 = int_to_ptr.vmem [resolvable:$true] %s57
      %63 = dma.hbm_to_vmem [thread:$0]  %s3, 256, %s58, [#allocation9], 64, 64, 4
    $region17: #{tpu_custom_call.1} parent=1 // pred_fallthru
      _
    // Predicated region
    $region18: #{tpu_custom_call.1} parent=1 // pred_check
      _
    $region19: #{tpu_custom_call.1} parent=1 // pred_check_branch
      %65 = sbr.rel (0) target = $region21
    $region20: #{tpu_custom_call.1} parent=1 // pred_region
      %s67 = ssub.s32 256, 256
      %68 = vsyncadd [#allocation9], %s67
      %s69 = sshll.u32 [#allocation10], 4
      %s70 = int_to_ptr.vmem [resolvable:$true] %s69
      %75 = dma.hbm_to_vmem [thread:$0]  %s4, 256, %s70, [#allocation9], 64, 64, 4
    $region21: #{tpu_custom_call.1} parent=1 // pred_fallthru
      _
    // Predicated region
    $region22: #{tpu_custom_call.1} parent=1 // pred_check
      _
    $region23: #{tpu_custom_call.1} parent=1 // pred_check_branch
      %77 = sbr.rel (0) target = $region25
    $region24: #{tpu_custom_call.1} parent=1 // pred_region
      %s79 = ssub.s32 256, 256
      %80 = vsyncadd [#allocation12], %s79
      %s81 = sshll.u32 [#allocation11], 4
      %s82 = int_to_ptr.vmem [resolvable:$true] %s81
      %87 = dma.hbm_to_vmem [thread:$0]  %s5, 256, %s82, [#allocation12], 64, 64, 4
    $region25: #{tpu_custom_call.1} parent=1 // pred_fallthru
      _
    // Predicated region
    $region26: #{tpu_custom_call.1} parent=1 // pred_check
      _
    $region27: #{tpu_custom_call.1} parent=1 // pred_check_branch
      %89 = sbr.rel (0) target = $region29
    $region28: #{tpu_custom_call.1} parent=1 // pred_region
      %90 = dma.done [#allocation3], 128
    $region29: #{tpu_custom_call.1} parent=1 // pred_fallthru
      _
    // Predicated region
    $region30: #{tpu_custom_call.1} parent=1 // pred_check
      _
    $region31: #{tpu_custom_call.1} parent=1 // pred_check_branch
      %92 = sbr.rel (0) target = $region33
    $region32: #{tpu_custom_call.1} parent=1 // pred_region
      %93 = dma.done [#allocation6], 128
    $region33: #{tpu_custom_call.1} parent=1 // pred_fallthru
      _
    // Predicated region
    $region34: #{tpu_custom_call.1} parent=1 // pred_check
      _
    $region35: #{tpu_custom_call.1} parent=1 // pred_check_branch
      %95 = sbr.rel (0) target = $region37
    $region36: #{tpu_custom_call.1} parent=1 // pred_region
      %96 = dma.done [#allocation6], 128
    $region37: #{tpu_custom_call.1} parent=1 // pred_fallthru
      _
    // Predicated region
    $region38: #{tpu_custom_call.1} parent=1 // pred_check
      _
    $region39: #{tpu_custom_call.1} parent=1 // pred_check_branch
      %98 = sbr.rel (0) target = $region41
    $region40: #{tpu_custom_call.1} parent=1 // pred_region
      %99 = dma.done [#allocation9], 256
    $region41: #{tpu_custom_call.1} parent=1 // pred_fallthru
      _
    // Predicated region
    $region42: #{tpu_custom_call.1} parent=1 // pred_check
      _
    $region43: #{tpu_custom_call.1} parent=1 // pred_check_branch
      %101 = sbr.rel (0) target = $region45
    $region44: #{tpu_custom_call.1} parent=1 // pred_region
      %102 = dma.done [#allocation9], 256
    $region45: #{tpu_custom_call.1} parent=1 // pred_fallthru
      _
    // Predicated region
    $region46: #{tpu_custom_call.1} parent=1 // pred_check
      _
    $region47: #{tpu_custom_call.1} parent=1 // pred_check_branch
      %104 = sbr.rel (0) target = $region49
    $region48: #{tpu_custom_call.1} parent=1 // pred_region
      %105 = dma.done [#allocation12], 256
    $region49: #{tpu_custom_call.1} parent=1 // pred_fallthru
      _
    %v107 = vld [vmem:[#allocation2] sm:$0xf]
    %v108 = vld [vmem:[#allocation2 + $0x4] sm:$0xf]
    %v109 = vld [vmem:[#allocation8] sm:$0xf]
    %v110 = vld [vmem:[#allocation8 + $0x4] sm:$0xf]
    %v111 = vld [vmem:[#allocation8 + $0x8] sm:$0xf]
    %v112 = vld [vmem:[#allocation8 + $0xc] sm:$0xf]
    %v115 = vunpack.c.l.b16 %v107
    %v116 = vunpack.c.l.b16 %v108
    %v117 = vpack.c.b16 %v116, %v115
    %v122 = vunpack.c.l.b16 %v109
    %v123 = vunpack.c.l.b16 %v110
    %v124 = vunpack.c.l.b16 %v111
    %v125 = vunpack.c.l.b16 %v112
    %v126 = vpack.c.b16 %v123, %v122
    %v127 = vpack.c.b16 %v125, %v124
    %vm130 = vcmask 261120
    %v132 = vsel %vm130, %v117, 0
    %134 = vmatprep.subr.bf16.mxu0 0
    %135 = vmatpush1.bf16.msra.mxu0 0
    %136 = vmatprep.subr.bf16.mxu0 0
    %137 = vmatpush1.bf16.msra.mxu0 0
    %138 = vmatprep.subr.bf16.mxu0 0
    %139 = vmatpush1.bf16.msra.mxu0 0
    %140 = vmatprep.subr.bf16.mxu0 0
    %141 = vmatpush1.bf16.msra.mxu0 0
    %142 = vmatprep.subr.bf16.mxu0 0
    %143 = vmatpush1.bf16.msra.mxu0 0
    %144 = vmatprep.subr.bf16.mxu0 0
    %145 = vmatpush1.bf16.msra.mxu0 0
    %146 = vmatprep.subr.bf16.mxu0 0
    %147 = vmatpush1.bf16.msra.mxu0 %v127
    %148 = vmatprep.subr.bf16.mxu0 0
    %149 = vmatpush1.bf16.msra.mxu0 %v126
    %150 = vmatprep.subr.bf16.mxu0 0
    %151 = vmatpush2.bf16.msra.mxu0 0
    %152 = vmatprep.subr.bf16.mxu0 0
    %153 = vmatpush2.bf16.msra.mxu0 0
    %154 = vmatprep.subr.bf16.mxu0 0
    %155 = vmatpush2.bf16.msra.mxu0 0
    %156 = vmatprep.subr.bf16.mxu0 0
    %157 = vmatpush2.bf16.msra.mxu0 0
    %158 = vmatprep.subr.bf16.mxu0 0
    %159 = vmatpush2.bf16.msra.mxu0 0
    %160 = vmatprep.subr.bf16.mxu0 0
    %161 = vmatpush2.bf16.msra.mxu0 0
    %162 = vmatprep.subr.bf16.mxu0 0
    %163 = vmatpush2.bf16.msra.mxu0 0
    %164 = vmatprep.subr.bf16.mxu0 0
    %165 = vmatpush2.bf16.msra.mxu0 0
    %166 = vmatprep.mubr.bf16.mxu0 0
    %167 = vmatmul.mubr.bf16.gmra.mxu0 %v132
    %v168 = vpop.f32.mrf.mxu0
    %v169 = vadd.f32 0.0, %v168
    %v170 = vpop.f32.mrf.mxu0
    %v171 = vpop.f32.mrf.mxu0
    %v172 = vadd.f32 0.0, %v171
    %v173 = vpop.f32.mrf.mxu0
    %174 = vdwg.mxu0
    %v175 = vld [vmem:[#allocation5] sm:$0xf]
    %v176 = vld [vmem:[#allocation5 + $0x4] sm:$0xf]
    %v177 = vld [vmem:[#allocation10] sm:$0xf]
    %v178 = vld [vmem:[#allocation10 + $0x4] sm:$0xf]
    %v179 = vld [vmem:[#allocation10 + $0x8] sm:$0xf]
    %v180 = vld [vmem:[#allocation10 + $0xc] sm:$0xf]
    %v183 = vunpack.c.l.b16 %v175
    %v184 = vunpack.c.l.b16 %v176
    %v185 = vpack.c.b16 %v184, %v183
    %v190 = vunpack.c.l.b16 %v177
    %v191 = vunpack.c.l.b16 %v178
    %v192 = vunpack.c.l.b16 %v179
    %v193 = vunpack.c.l.b16 %v180
    %v194 = vpack.c.b16 %v191, %v190
    %v195 = vpack.c.b16 %v193, %v192
    %v199 = vsel %vm130, %v185, 0
    %201 = vmatprep.subr.bf16.mxu0 0
    %202 = vmatpush1.bf16.msra.mxu0 0
    %203 = vmatprep.subr.bf16.mxu0 0
    %204 = vmatpush1.bf16.msra.mxu0 0
    %205 = vmatprep.subr.bf16.mxu0 0
    %206 = vmatpush1.bf16.msra.mxu0 0
    %207 = vmatprep.subr.bf16.mxu0 0
    %208 = vmatpush1.bf16.msra.mxu0 0
    %209 = vmatprep.subr.bf16.mxu0 0
    %210 = vmatpush1.bf16.msra.mxu0 0
    %211 = vmatprep.subr.bf16.mxu0 0
    %212 = vmatpush1.bf16.msra.mxu0 0
    %213 = vmatprep.subr.bf16.mxu0 0
    %214 = vmatpush1.bf16.msra.mxu0 %v195
    %215 = vmatprep.subr.bf16.mxu0 0
    %216 = vmatpush1.bf16.msra.mxu0 %v194
    %217 = vmatprep.subr.bf16.mxu0 0
    %218 = vmatpush2.bf16.msra.mxu0 0
    %219 = vmatprep.subr.bf16.mxu0 0
    %220 = vmatpush2.bf16.msra.mxu0 0
    %221 = vmatprep.subr.bf16.mxu0 0
    %222 = vmatpush2.bf16.msra.mxu0 0
    %223 = vmatprep.subr.bf16.mxu0 0
    %224 = vmatpush2.bf16.msra.mxu0 0
    %225 = vmatprep.subr.bf16.mxu0 0
    %226 = vmatpush2.bf16.msra.mxu0 0
    %227 = vmatprep.subr.bf16.mxu0 0
    %228 = vmatpush2.bf16.msra.mxu0 0
    %229 = vmatprep.subr.bf16.mxu0 0
    %230 = vmatpush2.bf16.msra.mxu0 0
    %231 = vmatprep.subr.bf16.mxu0 0
    %232 = vmatpush2.bf16.msra.mxu0 0
    %233 = vmatprep.mubr.bf16.mxu0 0
    %234 = vmatmul.mubr.bf16.gmra.mxu0 %v199
    %v235 = vpop.f32.mrf.mxu0
    %v236 = vadd.f32 0.0, %v235
    %v237 = vpop.f32.mrf.mxu0
    %v238 = vpop.f32.mrf.mxu0
    %v239 = vadd.f32 0.0, %v238
    %v240 = vpop.f32.mrf.mxu0
    %241 = vdwg.mxu0
    %v242 = vld [vmem:[#allocation7] sm:$0xf]
    %v243 = vld [vmem:[#allocation7 + $0x4] sm:$0xf]
    %v244 = vld [vmem:[#allocation11] sm:$0xf]
    %v245 = vld [vmem:[#allocation11 + $0x4] sm:$0xf]
    %v246 = vld [vmem:[#allocation11 + $0x8] sm:$0xf]
    %v247 = vld [vmem:[#allocation11 + $0xc] sm:$0xf]
    %v250 = vunpack.c.l.b16 %v242
    %v251 = vunpack.c.l.b16 %v243
    %v252 = vpack.c.b16 %v251, %v250
    %v257 = vunpack.c.l.b16 %v244
    %v258 = vunpack.c.l.b16 %v245
    %v259 = vunpack.c.l.b16 %v246
    %v260 = vunpack.c.l.b16 %v247
    %v261 = vpack.c.b16 %v258, %v257
    %v262 = vpack.c.b16 %v260, %v259
    %v266 = vsel %vm130, %v252, 0
    %268 = vmatprep.subr.bf16.mxu0 0
    %269 = vmatpush1.bf16.msra.mxu0 0
    %270 = vmatprep.subr.bf16.mxu0 0
    %271 = vmatpush1.bf16.msra.mxu0 0
    %272 = vmatprep.subr.bf16.mxu0 0
    %273 = vmatpush1.bf16.msra.mxu0 0
    %274 = vmatprep.subr.bf16.mxu0 0
    %275 = vmatpush1.bf16.msra.mxu0 0
    %276 = vmatprep.subr.bf16.mxu0 0
    %277 = vmatpush1.bf16.msra.mxu0 0
    %278 = vmatprep.subr.bf16.mxu0 0
    %279 = vmatpush1.bf16.msra.mxu0 0
    %280 = vmatprep.subr.bf16.mxu0 0
    %281 = vmatpush1.bf16.msra.mxu0 %v262
    %282 = vmatprep.subr.bf16.mxu0 0
    %283 = vmatpush1.bf16.msra.mxu0 %v261
    %284 = vmatprep.subr.bf16.mxu0 0
    %285 = vmatpush2.bf16.msra.mxu0 0
    %286 = vmatprep.subr.bf16.mxu0 0
    %287 = vmatpush2.bf16.msra.mxu0 0
    %288 = vmatprep.subr.bf16.mxu0 0
    %289 = vmatpush2.bf16.msra.mxu0 0
    %290 = vmatprep.subr.bf16.mxu0 0
    %291 = vmatpush2.bf16.msra.mxu0 0
    %292 = vmatprep.subr.bf16.mxu0 0
    %293 = vmatpush2.bf16.msra.mxu0 0
    %294 = vmatprep.subr.bf16.mxu0 0
    %295 = vmatpush2.bf16.msra.mxu0 0
    %296 = vmatprep.subr.bf16.mxu0 0
    %297 = vmatpush2.bf16.msra.mxu0 0
    %298 = vmatprep.subr.bf16.mxu0 0
    %299 = vmatpush2.bf16.msra.mxu0 0
    %300 = vmatprep.mubr.bf16.mxu0 0
    %301 = vmatmul.mubr.bf16.gmra.mxu0 %v266
    %v302 = vpop.f32.mrf.mxu0
    %v303 = vadd.f32 0.0, %v302
    %v304 = vpop.f32.mrf.mxu0
    %v305 = vpop.f32.mrf.mxu0
    %v306 = vadd.f32 0.0, %v305
    %v307 = vpop.f32.mrf.mxu0
    %308 = vdwg.mxu0
    %v309 = vpack.c.bf16 %v169, %v169
    %v310 = vpack.c.bf16 %v172, %v172
    %v311 = vpack.c.bf16 %v236, %v236
    %v312 = vpack.c.bf16 %v239, %v239
    %v313 = vpack.c.bf16 %v303, %v303
    %v314 = vpack.c.bf16 %v306, %v306
    %v316 = vsel %vm130, %v309, 0
    %v319 = vsel %vm130, %v311, 0
    %321 = vmatprep.subr.bf16.mxu0 0
    %322 = vmatpush1.bf16.xpose.msra.mxu0 0
    %323 = vmatprep.subr.bf16.mxu0 0
    %324 = vmatpush1.bf16.xpose.msra.mxu0 0
    %325 = vmatprep.subr.bf16.mxu0 0
    %326 = vmatpush1.bf16.xpose.msra.mxu0 0
    %327 = vmatprep.subr.bf16.mxu0 0
    %328 = vmatpush1.bf16.xpose.msra.mxu0 0
    %329 = vmatprep.subr.bf16.mxu0 0
    %330 = vmatpush1.bf16.xpose.msra.mxu0 0
    %331 = vmatprep.subr.bf16.mxu0 0
    %332 = vmatpush1.bf16.xpose.msra.mxu0 0
    %333 = vmatprep.subr.bf16.mxu0 0
    %334 = vmatpush1.bf16.xpose.msra.mxu0 0
    %335 = vmatprep.subr.bf16.mxu0 0
    %336 = vmatpush1.bf16.xpose.msra.mxu0 %v319
    %337 = vmatprep.subr.bf16.mxu0 0
    %338 = vmatpush2.bf16.xpose.msra.mxu0 0
    %339 = vmatprep.subr.bf16.mxu0 0
    %340 = vmatpush2.bf16.xpose.msra.mxu0 0
    %341 = vmatprep.subr.bf16.mxu0 0
    %342 = vmatpush2.bf16.xpose.msra.mxu0 0
    %343 = vmatprep.subr.bf16.mxu0 0
    %344 = vmatpush2.bf16.xpose.msra.mxu0 0
    %345 = vmatprep.subr.bf16.mxu0 0
    %346 = vmatpush2.bf16.xpose.msra.mxu0 0
    %347 = vmatprep.subr.bf16.mxu0 0
    %348 = vmatpush2.bf16.xpose.msra.mxu0 0
    %349 = vmatprep.subr.bf16.mxu0 0
    %350 = vmatpush2.bf16.xpose.msra.mxu0 0
    %351 = vmatprep.subr.bf16.mxu0 0
    %352 = vmatpush2.bf16.xpose.msra.mxu0 0
    %353 = vmatprep.mubr.bf16.mxu0 0
    %354 = vmatmul.mubr.bf16.gmra.mxu0 %v316
    %v355 = vpop.f32.mrf.mxu0
    %v356 = vadd.f32 0.0, %v355
    %v357 = vpop.f32.mrf.mxu0
    %v358 = vpop.f32.mrf.mxu0
    %v359 = vpop.f32.mrf.mxu0
    %360 = vdwg.mxu0
    %v362 = vsel %vm130, %v310, 0
    %v365 = vsel %vm130, %v312, 0
    %367 = vmatprep.subr.bf16.mxu0 0
    %368 = vmatpush1.bf16.xpose.msra.mxu0 0
    %369 = vmatprep.subr.bf16.mxu0 0
    %370 = vmatpush1.bf16.xpose.msra.mxu0 0
    %371 = vmatprep.subr.bf16.mxu0 0
    %372 = vmatpush1.bf16.xpose.msra.mxu0 0
    %373 = vmatprep.subr.bf16.mxu0 0
    %374 = vmatpush1.bf16.xpose.msra.mxu0 0
    %375 = vmatprep.subr.bf16.mxu0 0
    %376 = vmatpush1.bf16.xpose.msra.mxu0 0
    %377 = vmatprep.subr.bf16.mxu0 0
    %378 = vmatpush1.bf16.xpose.msra.mxu0 0
    %379 = vmatprep.subr.bf16.mxu0 0
    %380 = vmatpush1.bf16.xpose.msra.mxu0 0
    %381 = vmatprep.subr.bf16.mxu0 0
    %382 = vmatpush1.bf16.xpose.msra.mxu0 %v365
    %383 = vmatprep.subr.bf16.mxu0 0
    %384 = vmatpush2.bf16.xpose.msra.mxu0 0
    %385 = vmatprep.subr.bf16.mxu0 0
    %386 = vmatpush2.bf16.xpose.msra.mxu0 0
    %387 = vmatprep.subr.bf16.mxu0 0
    %388 = vmatpush2.bf16.xpose.msra.mxu0 0
    %389 = vmatprep.subr.bf16.mxu0 0
    %390 = vmatpush2.bf16.xpose.msra.mxu0 0
    %391 = vmatprep.subr.bf16.mxu0 0
    %392 = vmatpush2.bf16.xpose.msra.mxu0 0
    %393 = vmatprep.subr.bf16.mxu0 0
    %394 = vmatpush2.bf16.xpose.msra.mxu0 0
    %395 = vmatprep.subr.bf16.mxu0 0
    %396 = vmatpush2.bf16.xpose.msra.mxu0 0
    %397 = vmatprep.subr.bf16.mxu0 0
    %398 = vmatpush2.bf16.xpose.msra.mxu0 0
    %399 = vmatprep.mubr.bf16.mxu0 0
    %400 = vmatmul.mubr.bf16.gmra.mxu0 %v362
    %v401 = vpop.f32.mrf.mxu0
    %v402 = vadd.f32 0.0, %v401
    %v403 = vpop.f32.mrf.mxu0
    %v404 = vpop.f32.mrf.mxu0
    %v405 = vpop.f32.mrf.mxu0
    %406 = vdwg.mxu0
    %vm407 = vcmask 64512
    %v408 = vsel %vm407, %v356, -inf
    %409 = vmax.xlane.f32.xlu0 %v408
    %v410 = vpop.xlane.xlu0 %409
    %v411 = vsel %vm407, %v402, -inf
    %412 = vmax.xlane.f32.xlu0 %v411
    %v413 = vpop.xlane.xlu0 %412
    %v414 = vsub.f32 %v356, %v410
    %v415 = vsub.f32 %v402, %v413
    %v416 = vmul.f32 %v414, 1.442695
    %v417 = vpow.pop %v416
    %v418 = vmul.f32 %v415, 1.442695
    %v419 = vpow.pop %v418
    %v420 = vsel %vm407, %v417, 0.0
    %421 = vadd.xlane.f32.xlu0 %v420
    %v422 = vpop.xlane.xlu0 %421
    %v423 = vsel %vm407, %v419, 0.0
    %424 = vadd.xlane.f32.xlu0 %v423
    %v425 = vpop.xlane.xlu0 %424
    %v426 = vrcp.pop %v422
    %v427 = vrcp.pop %v425
    %v428 = vmul.f32 %v417, %v426
    %v429 = vmul.f32 %v419, %v427
    %v430 = vpack.c.bf16 %v428, %v428
    %v431 = vpack.c.bf16 %v429, %v429
    %v433 = vsel %vm407, %v430, 0
    %vm435 = vcmask 1043456
    %v437 = vsel %vm435, %v313, 0
    %439 = vmatprep.subr.bf16.mxu0 0
    %440 = vmatpush1.bf16.msra.mxu0 0
    %441 = vmatprep.subr.bf16.mxu0 0
    %442 = vmatpush1.bf16.msra.mxu0 0
    %443 = vmatprep.subr.bf16.mxu0 0
    %444 = vmatpush1.bf16.msra.mxu0 0
    %445 = vmatprep.subr.bf16.mxu0 0
    %446 = vmatpush1.bf16.msra.mxu0 0
    %447 = vmatprep.subr.bf16.mxu0 0
    %448 = vmatpush1.bf16.msra.mxu0 0
    %449 = vmatprep.subr.bf16.mxu0 0
    %450 = vmatpush1.bf16.msra.mxu0 0
    %451 = vmatprep.subr.bf16.mxu0 0
    %452 = vmatpush1.bf16.msra.mxu0 0
    %453 = vmatprep.subr.bf16.mxu0 0
    %454 = vmatpush1.bf16.msra.mxu0 %v437
    %455 = vmatprep.subr.bf16.mxu0 0
    %456 = vmatpush2.bf16.msra.mxu0 0
    %457 = vmatprep.subr.bf16.mxu0 0
    %458 = vmatpush2.bf16.msra.mxu0 0
    %459 = vmatprep.subr.bf16.mxu0 0
    %460 = vmatpush2.bf16.msra.mxu0 0
    %461 = vmatprep.subr.bf16.mxu0 0
    %462 = vmatpush2.bf16.msra.mxu0 0
    %463 = vmatprep.subr.bf16.mxu0 0
    %464 = vmatpush2.bf16.msra.mxu0 0
    %465 = vmatprep.subr.bf16.mxu0 0
    %466 = vmatpush2.bf16.msra.mxu0 0
    %467 = vmatprep.subr.bf16.mxu0 0
    %468 = vmatpush2.bf16.msra.mxu0 0
    %469 = vmatprep.subr.bf16.mxu0 0
    %470 = vmatpush2.bf16.msra.mxu0 0
    %471 = vmatprep.mubr.bf16.mxu0 0
    %472 = vmatmul.mubr.bf16.gmra.mxu0 %v433
    %v473 = vpop.f32.mrf.mxu0
    %v474 = vadd.f32 0.0, %v473
    %v475 = vpop.f32.mrf.mxu0
    %v476 = vpop.f32.mrf.mxu0
    %v477 = vpop.f32.mrf.mxu0
    %478 = vdwg.mxu0
    %v480 = vsel %vm407, %v431, 0
    %v483 = vsel %vm435, %v314, 0
    %485 = vmatprep.subr.bf16.mxu0 0
    %486 = vmatpush1.bf16.msra.mxu0 0
    %487 = vmatprep.subr.bf16.mxu0 0
    %488 = vmatpush1.bf16.msra.mxu0 0
    %489 = vmatprep.subr.bf16.mxu0 0
    %490 = vmatpush1.bf16.msra.mxu0 0
    %491 = vmatprep.subr.bf16.mxu0 0
    %492 = vmatpush1.bf16.msra.mxu0 0
    %493 = vmatprep.subr.bf16.mxu0 0
    %494 = vmatpush1.bf16.msra.mxu0 0
    %495 = vmatprep.subr.bf16.mxu0 0
    %496 = vmatpush1.bf16.msra.mxu0 0
    %497 = vmatprep.subr.bf16.mxu0 0
    %498 = vmatpush1.bf16.msra.mxu0 0
    %499 = vmatprep.subr.bf16.mxu0 0
    %500 = vmatpush1.bf16.msra.mxu0 %v483
    %501 = vmatprep.subr.bf16.mxu0 0
    %502 = vmatpush2.bf16.msra.mxu0 0
    %503 = vmatprep.subr.bf16.mxu0 0
    %504 = vmatpush2.bf16.msra.mxu0 0
    %505 = vmatprep.subr.bf16.mxu0 0
    %506 = vmatpush2.bf16.msra.mxu0 0
    %507 = vmatprep.subr.bf16.mxu0 0
    %508 = vmatpush2.bf16.msra.mxu0 0
    %509 = vmatprep.subr.bf16.mxu0 0
    %510 = vmatpush2.bf16.msra.mxu0 0
    %511 = vmatprep.subr.bf16.mxu0 0
    %512 = vmatpush2.bf16.msra.mxu0 0
    %513 = vmatprep.subr.bf16.mxu0 0
    %514 = vmatpush2.bf16.msra.mxu0 0
    %515 = vmatprep.subr.bf16.mxu0 0
    %516 = vmatpush2.bf16.msra.mxu0 0
    %517 = vmatprep.mubr.bf16.mxu0 0
    %518 = vmatmul.mubr.bf16.gmra.mxu0 %v480
    %v519 = vpop.f32.mrf.mxu0
    %v520 = vadd.f32 0.0, %v519
    %v521 = vpop.f32.mrf.mxu0
    %v522 = vpop.f32.mrf.mxu0
    %v523 = vpop.f32.mrf.mxu0
    %524 = vdwg.mxu0
    %v525 = vcombine.high %v474, 0.0
    %v527 = vunpack.c.l.s4 1983009808
    %v528 = vunpack.c.0.s8 %v527
    %v529 = vlaneseq
    %v530 = vshrl.u32 %v529, 7
    %v531 = vsub.s32 %v528, %v530
    %v532 = vrot.slane %v474, %v531
    %v534 = vunpack.c.l.s4 1983009808
    %v535 = vunpack.c.0.s8 %v534
    %v536 = vlaneseq
    %v537 = vshrl.u32 %v536, 7
    %v538 = vsub.s32 %v535, %v537
    %v539 = vrot.slane %v525, %v538
    %v540 = vcombine.high %v520, 0.0
    %v542 = vunpack.c.l.s4 1983009808
    %v543 = vunpack.c.0.s8 %v542
    %v544 = vlaneseq
    %v545 = vshrl.u32 %v544, 7
    %v546 = vsub.s32 %v543, %v545
    %v547 = vrot.slane %v520, %v546
    %v549 = vunpack.c.l.s4 1983009808
    %v550 = vunpack.c.0.s8 %v549
    %v551 = vlaneseq
    %v552 = vshrl.u32 %v551, 7
    %v553 = vsub.s32 %v550, %v552
    %v554 = vrot.slane %v540, %v553
    %v555 = vcombine.low %v532, %v547
    %v556 = vcombine.high %v532, %v547
    %v558 = vunpack.c.l.s4 1934713408
    %v559 = vunpack.c.0.s8 %v558
    %v560 = vlaneseq
    %v561 = vshrl.u32 %v560, 7
    %v562 = vsub.s32 %v559, %v561
    %v563 = vrot.slane %v555, %v562
    %v565 = vunpack.c.l.s4 1934713408
    %v566 = vunpack.c.0.s8 %v565
    %v567 = vlaneseq
    %v568 = vshrl.u32 %v567, 7
    %v569 = vsub.s32 %v566, %v568
    %v570 = vrot.slane %v556, %v569
    %v571 = vcombine.low %v539, %v554
    %v572 = vcombine.high %v539, %v554
    %v574 = vunpack.c.l.s4 1934713408
    %v575 = vunpack.c.0.s8 %v574
    %v576 = vlaneseq
    %v577 = vshrl.u32 %v576, 7
    %v578 = vsub.s32 %v575, %v577
    %v579 = vrot.slane %v571, %v578
    %v581 = vunpack.c.l.s4 1934713408
    %v582 = vunpack.c.0.s8 %v581
    %v583 = vlaneseq
    %v584 = vshrl.u32 %v583, 7
    %v585 = vsub.s32 %v582, %v584
    %v586 = vrot.slane %v572, %v585
    %v587 = vcombine.high %v563, 0.0
    %v588 = vcombine.high %v570, 0.0
    %v589 = vcombine.high %v579, 0.0
    %v590 = vcombine.high %v586, 0.0
    %592 = vrot.lane.b32.xlu0 %v587, 32
    %v593 = vpop.permute.xlu0 %592
    %596 = vrot.lane.b32.xlu0 %v570, 64
    %v597 = vpop.permute.xlu0 %596
    %600 = vrot.lane.b32.xlu0 %v588, 96
    %v601 = vpop.permute.xlu0 %600
    %604 = vrot.lane.b32.xlu0 %v589, 32
    %v605 = vpop.permute.xlu0 %604
    %608 = vrot.lane.b32.xlu0 %v586, 64
    %v609 = vpop.permute.xlu0 %608
    %612 = vrot.lane.b32.xlu0 %v590, 96
    %v613 = vpop.permute.xlu0 %612
    %v615 = vsel %vm130, %v563, %v593
    %vm616 = vcmask 523264
    %v617 = vsel %vm616, %v615, %v597
    %vm618 = vcmask 785408
    %v619 = vsel %vm618, %v617, %v601
    %v620 = vsel %vm130, %v579, %v605
    %v621 = vsel %vm616, %v620, %v609
    %v622 = vsel %vm618, %v621, %v613
    %v625 = vcombine.low %v619, %v622
    %v627 = vunpack.c.l.s4 1983009808
    %v628 = vunpack.c.0.s8 %v627
    %v629 = vlaneseq
    %v630 = vshrl.u32 %v629, 7
    %v631 = vsub.s32 %v628, %v630
    %v632 = vrot.slane %v625, %v631
    %634 = vst [vmem:[#allocation13] sm:$0xf] %v632
    // Predicated region
    $region50: #{tpu_custom_call.1} parent=1 // pred_check
      _
    $region51: #{tpu_custom_call.1} parent=1 // pred_check_branch
      %636 = sbr.rel (0) target = $region53
    $region52: #{tpu_custom_call.1} parent=1 // pred_region
      %s638 = ssub.s32 64, 64
      %639 = vsyncadd [#allocation4], %s638
      %s641 = sshll.u32 [#allocation13], 4
      %s642 = int_to_ptr.vmem [resolvable:$true] %s641
      %644 = dma.vmem_to_hbm [thread:$0]  %s642, 64, %s6, [#allocation4]
    $region53: #{tpu_custom_call.1} parent=1 // pred_fallthru
      _
    // Predicated region
    $region54: #{tpu_custom_call.1} parent=1 // pred_check
      _
    $region55: #{tpu_custom_call.1} parent=1 // pred_check_branch
      %646 = sbr.rel (0) target = $region57
    $region56: #{tpu_custom_call.1} parent=1 // pred_region
      %647 = dma.done [#allocation4], 64
    $region57: #{tpu_custom_call.1} parent=1 // pred_fallthru
      _
    %648 = vsyncpa [#allocation3], 1
    %649 = vsyncpa [#allocation6], 1
    %650 = vsyncpa [#allocation9], 1
    %651 = vsyncpa [#allocation12], 1
    %652 = vsyncpa [#allocation4], 1

// kernel: tpu_custom_call.1
$region0: #{tpu_custom_call.1}
  #allocation0 [shape = 'u32[]', space=smem, size = 0x4, offset = 0x4, fixed_abs, tag = 'smem constant byte address 0x4 - core index']
  #allocation1 [shape = 'u32[144,128]{1,0:T(1,128)}', space=vmem, size = 0x12000, scoped, tag = 'internal scratch']
  %s0 = inlined_call_operand.hbm [shape: bf16[16,32], index: 0, kind: input, shape index: {}]
  %s1 = inlined_call_operand.hbm [shape: bf16[16,32], index: 1, kind: input, shape index: {}]
  %s2 = inlined_call_operand.hbm [shape: bf16[16,32], index: 2, kind: input, shape index: {}]
  %s3 = inlined_call_operand.hbm [shape: bf16[32,32], index: 3, kind: input, shape index: {}]
  %s4 = inlined_call_operand.hbm [shape: bf16[32,32], index: 4, kind: input, shape index: {}]
  %s5 = inlined_call_operand.hbm [shape: bf16[32,32], index: 5, kind: input, shape index: {}]
  %s6 = inlined_call_operand.hbm [shape: f32[2,256], index: 6, kind: output, shape index: {}]
  %s7 = sld [smem:[#allocation0]]
  $region58: #{tpu_custom_call.1} parent=0
    _
  %s9 = ssub.s32 1, %s7
  %s10 = scalar_select 0, %s9, %s7
  $region1: #{tpu_custom_call.1} parent=0
    #allocation2 [shape = 'u8[4096]{0}', space=vmem, size = 0x1000, scoped, tag = 'input window, operand 0, single buffered']
    #allocation3 [shape = 's32[1]{0}', space=sflag, size = 0x4, scoped, tag = 'scoped memory for tpu_custom_call.1']
    #allocation4 [shape = 's32[1]{0}', space=sflag, size = 0x4, scoped, tag = 'scoped memory for tpu_custom_call.1']
    #allocation5 [shape = 'u8[4096]{0}', space=vmem, size = 0x1000, scoped, tag = 'input window, operand 1, single buffered']
    #allocation6 [shape = 's32[1]{0}', space=sflag, size = 0x4, scoped, tag = 'scoped memory for tpu_custom_call.1']
    #allocation7 [shape = 'u8[4096]{0}', space=vmem, size = 0x1000, scoped, tag = 'input window, operand 2, single buffered']
    #allocation8 [shape = 'u8[8192]{0}', space=vmem, size = 0x2000, scoped, tag = 'input window, operand 3, single buffered']
    #allocation9 [shape = 's32[1]{0}', space=sflag, size = 0x4, scoped, tag = 'scoped memory for tpu_custom_call.1']
    #allocation10 [shape = 'u8[8192]{0}', space=vmem, size = 0x2000, scoped, tag = 'input window, operand 4, single buffered']
    #allocation11 [shape = 'u8[8192]{0}', space=vmem, size = 0x2000, scoped, tag = 'input window, operand 5, single buffered']
    #allocation12 [shape = 's32[1]{0}', space=sflag, size = 0x4, scoped, tag = 'scoped memory for tpu_custom_call.1']
    #allocation13 [shape = 'u8[2048]{0}', space=vmem, size = 0x800, scoped, tag = 'output window, operand 0, single buffered']
    %11 = vsyncpa [#allocation3], 0
    %12 = vsyncpa [#allocation6], 0
    %13 = vsyncpa [#allocation9], 0
    %14 = vsyncpa [#allocation12], 0
    %15 = vsyncpa [#allocation4], 0
    // Predicated region
    $region2: #{tpu_custom_call.1} parent=1 // pred_check
      _
    $region3: #{tpu_custom_call.1} parent=1 // pred_check_branch
      %17 = sbr.rel (0) target = $region5
    $region4: #{tpu_custom_call.1} parent=1 // pred_region
      %s19 = ssub.s32 128, 128
      %20 = vsyncadd [#allocation3], %s19
      %s21 = sshll.u32 [#allocation2], 4
      %s22 = int_to_ptr.vmem [resolvable:$true] %s21
      %27 = dma.hbm_to_vmem [thread:$0]  %s0, 128, %s22, [#allocation3], 64, 64, 4
    $region5: #{tpu_custom_call.1} parent=1 // pred_fallthru
      _
    // Predicated region
    $region6: #{tpu_custom_call.1} parent=1 // pred_check
      _
    $region7: #{tpu_custom_call.1} parent=1 // pred_check_branch
      %29 = sbr.rel (0) target = $region9
    $region8: #{tpu_custom_call.1} parent=1 // pred_region
      %s31 = ssub.s32 128, 128
      %32 = vsyncadd [#allocation6], %s31
      %s33 = sshll.u32 [#allocation5], 4
      %s34 = int_to_ptr.vmem [resolvable:$true] %s33
      %39 = dma.hbm_to_vmem [thread:$0]  %s1, 128, %s34, [#allocation6], 64, 64, 4
    $region9: #{tpu_custom_call.1} parent=1 // pred_fallthru
      _
    // Predicated region
    $region10: #{tpu_custom_call.1} parent=1 // pred_check
      _
    $region11: #{tpu_custom_call.1} parent=1 // pred_check_branch
      %41 = sbr.rel (0) target = $region13
    $region12: #{tpu_custom_call.1} parent=1 // pred_region
      %s43 = ssub.s32 128, 128
      %44 = vsyncadd [#allocation6], %s43
      %s45 = sshll.u32 [#allocation7], 4
      %s46 = int_to_ptr.vmem [resolvable:$true] %s45
      %51 = dma.hbm_to_vmem [thread:$0]  %s2, 128, %s46, [#allocation6], 64, 64, 4
    $region13: #{tpu_custom_call.1} parent=1 // pred_fallthru
      _
    // Predicated region
    $region14: #{tpu_custom_call.1} parent=1 // pred_check
      _
    $region15: #{tpu_custom_call.1} parent=1 // pred_check_branch
      %53 = sbr.rel (0) target = $region17
    $region16: #{tpu_custom_call.1} parent=1 // pred_region
      %s55 = ssub.s32 256, 256
      %56 = vsyncadd [#allocation9], %s55
      %s57 = sshll.u32 [#allocation8], 4
      %s58 = int_to_ptr.vmem [resolvable:$true] %s57
      %63 = dma.hbm_to_vmem [thread:$0]  %s3, 256, %s58, [#allocation9], 64, 64, 4
    $region17: #{tpu_custom_call.1} parent=1 // pred_fallthru
      _
    // Predicated region
    $region18: #{tpu_custom_call.1} parent=1 // pred_check
      _
    $region19: #{tpu_custom_call.1} parent=1 // pred_check_branch
      %65 = sbr.rel (0) target = $region21
    $region20: #{tpu_custom_call.1} parent=1 // pred_region
      %s67 = ssub.s32 256, 256
      %68 = vsyncadd [#allocation9], %s67
      %s69 = sshll.u32 [#allocation10], 4
      %s70 = int_to_ptr.vmem [resolvable:$true] %s69
      %75 = dma.hbm_to_vmem [thread:$0]  %s4, 256, %s70, [#allocation9], 64, 64, 4
    $region21: #{tpu_custom_call.1} parent=1 // pred_fallthru
      _
    // Predicated region
    $region22: #{tpu_custom_call.1} parent=1 // pred_check
      _
    $region23: #{tpu_custom_call.1} parent=1 // pred_check_branch
      %77 = sbr.rel (0) target = $region25
    $region24: #{tpu_custom_call.1} parent=1 // pred_region
      %s79 = ssub.s32 256, 256
      %80 = vsyncadd [#allocation12], %s79
      %s81 = sshll.u32 [#allocation11], 4
      %s82 = int_to_ptr.vmem [resolvable:$true] %s81
      %87 = dma.hbm_to_vmem [thread:$0]  %s5, 256, %s82, [#allocation12], 64, 64, 4
    $region25: #{tpu_custom_call.1} parent=1 // pred_fallthru
      _
    // Predicated region
    $region26: #{tpu_custom_call.1} parent=1 // pred_check
      _
    $region27: #{tpu_custom_call.1} parent=1 // pred_check_branch
      %89 = sbr.rel (0) target = $region29
    $region28: #{tpu_custom_call.1} parent=1 // pred_region
      %90 = dma.done [#allocation3], 128
    $region29: #{tpu_custom_call.1} parent=1 // pred_fallthru
      _
    // Predicated region
    $region30: #{tpu_custom_call.1} parent=1 // pred_check
      _
    $region31: #{tpu_custom_call.1} parent=1 // pred_check_branch
      %92 = sbr.rel (0) target = $region33
    $region32: #{tpu_custom_call.1} parent=1 // pred_region
      %93 = dma.done [#allocation6], 128
    $region33: #{tpu_custom_call.1} parent=1 // pred_fallthru
      _
    // Predicated region
    $region34: #{tpu_custom_call.1} parent=1 // pred_check
      _
    $region35: #{tpu_custom_call.1} parent=1 // pred_check_branch
      %95 = sbr.rel (0) target = $region37
    $region36: #{tpu_custom_call.1} parent=1 // pred_region
      %96 = dma.done [#allocation6], 128
    $region37: #{tpu_custom_call.1} parent=1 // pred_fallthru
      _
    // Predicated region
    $region38: #{tpu_custom_call.1} parent=1 // pred_check
      _
    $region39: #{tpu_custom_call.1} parent=1 // pred_check_branch
      %98 = sbr.rel (0) target = $region41
    $region40: #{tpu_custom_call.1} parent=1 // pred_region
      %99 = dma.done [#allocation9], 256
    $region41: #{tpu_custom_call.1} parent=1 // pred_fallthru
      _
    // Predicated region
    $region42: #{tpu_custom_call.1} parent=1 // pred_check
      _
    $region43: #{tpu_custom_call.1} parent=1 // pred_check_branch
      %101 = sbr.rel (0) target = $region45
    $region44: #{tpu_custom_call.1} parent=1 // pred_region
      %102 = dma.done [#allocation9], 256
    $region45: #{tpu_custom_call.1} parent=1 // pred_fallthru
      _
    // Predicated region
    $region46: #{tpu_custom_call.1} parent=1 // pred_check
      _
    $region47: #{tpu_custom_call.1} parent=1 // pred_check_branch
      %104 = sbr.rel (0) target = $region49
    $region48: #{tpu_custom_call.1} parent=1 // pred_region
      %105 = dma.done [#allocation12], 256
    $region49: #{tpu_custom_call.1} parent=1 // pred_fallthru
      _
    %v107 = vld [vmem:[#allocation2] sm:$0xf]
    %v108 = vld [vmem:[#allocation2 + $0x4] sm:$0xf]
    %v109 = vld [vmem:[#allocation8] sm:$0xf]
    %v110 = vld [vmem:[#allocation8 + $0x4] sm:$0xf]
    %v111 = vld [vmem:[#allocation8 + $0x8] sm:$0xf]
    %v112 = vld [vmem:[#allocation8 + $0xc] sm:$0xf]
    %v115 = vunpack.c.l.b16 %v107
    %v116 = vunpack.c.l.b16 %v108
    %v117 = vpack.c.b16 %v116, %v115
    %v122 = vunpack.c.l.b16 %v109
    %v123 = vunpack.c.l.b16 %v110
    %v124 = vunpack.c.l.b16 %v111
    %v125 = vunpack.c.l.b16 %v112
    %v126 = vpack.c.b16 %v123, %v122
    %v127 = vpack.c.b16 %v125, %v124
    %vm130 = vcmask 261120
    %v132 = vsel %vm130, %v117, 0
    %134 = vmatprep.subr.bf16.mxu0 0
    %135 = vmatpush1.bf16.msra.mxu0 0
    %136 = vmatprep.subr.bf16.mxu0 0
    %137 = vmatpush1.bf16.msra.mxu0 0
    %138 = vmatprep.subr.bf16.mxu0 0
    %139 = vmatpush1.bf16.msra.mxu0 0
    %140 = vmatprep.subr.bf16.mxu0 0
    %141 = vmatpush1.bf16.msra.mxu0 0
    %142 = vmatprep.subr.bf16.mxu0 0
    %143 = vmatpush1.bf16.msra.mxu0 0
    %144 = vmatprep.subr.bf16.mxu0 0
    %145 = vmatpush1.bf16.msra.mxu0 0
    %146 = vmatprep.subr.bf16.mxu0 0
    %147 = vmatpush1.bf16.msra.mxu0 %v127
    %148 = vmatprep.subr.bf16.mxu0 0
    %149 = vmatpush1.bf16.msra.mxu0 %v126
    %150 = vmatprep.subr.bf16.mxu0 0
    %151 = vmatpush2.bf16.msra.mxu0 0
    %152 = vmatprep.subr.bf16.mxu0 0
    %153 = vmatpush2.bf16.msra.mxu0 0
    %154 = vmatprep.subr.bf16.mxu0 0
    %155 = vmatpush2.bf16.msra.mxu0 0
    %156 = vmatprep.subr.bf16.mxu0 0
    %157 = vmatpush2.bf16.msra.mxu0 0
    %158 = vmatprep.subr.bf16.mxu0 0
    %159 = vmatpush2.bf16.msra.mxu0 0
    %160 = vmatprep.subr.bf16.mxu0 0
    %161 = vmatpush2.bf16.msra.mxu0 0
    %162 = vmatprep.subr.bf16.mxu0 0
    %163 = vmatpush2.bf16.msra.mxu0 0
    %164 = vmatprep.subr.bf16.mxu0 0
    %165 = vmatpush2.bf16.msra.mxu0 0
    %166 = vmatprep.mubr.bf16.mxu0 0
    %167 = vmatmul.mubr.bf16.gmra.mxu0 %v132
    %v168 = vpop.f32.mrf.mxu0
    %v169 = vadd.f32 0.0, %v168
    %v170 = vpop.f32.mrf.mxu0
    %v171 = vpop.f32.mrf.mxu0
    %v172 = vadd.f32 0.0, %v171
    %v173 = vpop.f32.mrf.mxu0
    %174 = vdwg.mxu0
    %v175 = vld [vmem:[#allocation5] sm:$0xf]
    %v176 = vld [vmem:[#allocation5 + $0x4] sm:$0xf]
    %v177 = vld [vmem:[#allocation10] sm:$0xf]
    %v178 = vld [vmem:[#allocation10 + $0x4] sm:$0xf]
    %v179 = vld [vmem:[#allocation10 + $0x8] sm:$0xf]
    %v180 = vld [vmem:[#allocation10 + $0xc] sm:$0xf]
    %v183 = vunpack.c.l.b16 %v175
    %v184 = vunpack.c.l.b16 %v176
    %v185 = vpack.c.b16 %v184, %v183
    %v190 = vunpack.c.l.b16 %v177
    %v191 = vunpack.c.l.b16 %v178
    %v192 = vunpack.c.l.b16 %v179
    %v193 = vunpack.c.l.b16 %v180
    %v194 = vpack.c.b16 %v191, %v190
    %v195 = vpack.c.b16 %v193, %v192
    %v199 = vsel %vm130, %v185, 0
    %201 = vmatprep.subr.bf16.mxu0 0
    %202 = vmatpush1.bf16.msra.mxu0 0
    %203 = vmatprep.subr.bf16.mxu0 0
    %204 = vmatpush1.bf16.msra.mxu0 0
    %205 = vmatprep.subr.bf16.mxu0 0
    %206 = vmatpush1.bf16.msra.mxu0 0
    %207 = vmatprep.subr.bf16.mxu0 0
    %208 = vmatpush1.bf16.msra.mxu0 0
    %209 = vmatprep.subr.bf16.mxu0 0
    %210 = vmatpush1.bf16.msra.mxu0 0
    %211 = vmatprep.subr.bf16.mxu0 0
    %212 = vmatpush1.bf16.msra.mxu0 0
    %213 = vmatprep.subr.bf16.mxu0 0
    %214 = vmatpush1.bf16.msra.mxu0 %v195
    %215 = vmatprep.subr.bf16.mxu0 0
    %216 = vmatpush1.bf16.msra.mxu0 %v194
    %217 = vmatprep.subr.bf16.mxu0 0
    %218 = vmatpush2.bf16.msra.mxu0 0
    %219 = vmatprep.subr.bf16.mxu0 0
    %220 = vmatpush2.bf16.msra.mxu0 0
    %221 = vmatprep.subr.bf16.mxu0 0
    %222 = vmatpush2.bf16.msra.mxu0 0
    %223 = vmatprep.subr.bf16.mxu0 0
    %224 = vmatpush2.bf16.msra.mxu0 0
    %225 = vmatprep.subr.bf16.mxu0 0
    %226 = vmatpush2.bf16.msra.mxu0 0
    %227 = vmatprep.subr.bf16.mxu0 0
    %228 = vmatpush2.bf16.msra.mxu0 0
    %229 = vmatprep.subr.bf16.mxu0 0
    %230 = vmatpush2.bf16.msra.mxu0 0
    %231 = vmatprep.subr.bf16.mxu0 0
    %232 = vmatpush2.bf16.msra.mxu0 0
    %233 = vmatprep.mubr.bf16.mxu0 0
    %234 = vmatmul.mubr.bf16.gmra.mxu0 %v199
    %v235 = vpop.f32.mrf.mxu0
    %v236 = vadd.f32 0.0, %v235
    %v237 = vpop.f32.mrf.mxu0
    %v238 = vpop.f32.mrf.mxu0
    %v239 = vadd.f32 0.0, %v238
    %v240 = vpop.f32.mrf.mxu0
    %241 = vdwg.mxu0
    %v242 = vld [vmem:[#allocation7] sm:$0xf]
    %v243 = vld [vmem:[#allocation7 + $0x4] sm:$0xf]
    %v244 = vld [vmem:[#allocation11] sm:$0xf]
    %v245 = vld [vmem:[#allocation11 + $0x4] sm:$0xf]
    %v246 = vld [vmem:[#allocation11 + $0x8] sm:$0xf]
    %v247 = vld [vmem:[#allocation11 + $0xc] sm:$0xf]
    %v250 = vunpack.c.l.b16 %v242
    %v251 = vunpack.c.l.b16 %v243
    %v252 = vpack.c.b16 %v251, %v250
    %v257 = vunpack.c.l.b16 %v244
    %v258 = vunpack.c.l.b16 %v245
    %v259 = vunpack.c.l.b16 %v246
    %v260 = vunpack.c.l.b16 %v247
    %v261 = vpack.c.b16 %v258, %v257
    %v262 = vpack.c.b16 %v260, %v259
    %v266 = vsel %vm130, %v252, 0
    %268 = vmatprep.subr.bf16.mxu0 0
    %269 = vmatpush1.bf16.msra.mxu0 0
    %270 = vmatprep.subr.bf16.mxu0 0
    %271 = vmatpush1.bf16.msra.mxu0 0
    %272 = vmatprep.subr.bf16.mxu0 0
    %273 = vmatpush1.bf16.msra.mxu0 0
    %274 = vmatprep.subr.bf16.mxu0 0
    %275 = vmatpush1.bf16.msra.mxu0 0
    %276 = vmatprep.subr.bf16.mxu0 0
    %277 = vmatpush1.bf16.msra.mxu0 0
    %278 = vmatprep.subr.bf16.mxu0 0
    %279 = vmatpush1.bf16.msra.mxu0 0
    %280 = vmatprep.subr.bf16.mxu0 0
    %281 = vmatpush1.bf16.msra.mxu0 %v262
    %282 = vmatprep.subr.bf16.mxu0 0
    %283 = vmatpush1.bf16.msra.mxu0 %v261
    %284 = vmatprep.subr.bf16.mxu0 0
    %285 = vmatpush2.bf16.msra.mxu0 0
    %286 = vmatprep.subr.bf16.mxu0 0
    %287 = vmatpush2.bf16.msra.mxu0 0
    %288 = vmatprep.subr.bf16.mxu0 0
    %289 = vmatpush2.bf16.msra.mxu0 0
    %290 = vmatprep.subr.bf16.mxu0 0
    %291 = vmatpush2.bf16.msra.mxu0 0
    %292 = vmatprep.subr.bf16.mxu0 0
    %293 = vmatpush2.bf16.msra.mxu0 0
    %294 = vmatprep.subr.bf16.mxu0 0
    %295 = vmatpush2.bf16.msra.mxu0 0
    %296 = vmatprep.subr.bf16.mxu0 0
    %297 = vmatpush2.bf16.msra.mxu0 0
    %298 = vmatprep.subr.bf16.mxu0 0
    %299 = vmatpush2.bf16.msra.mxu0 0
    %300 = vmatprep.mubr.bf16.mxu0 0
    %301 = vmatmul.mubr.bf16.gmra.mxu0 %v266
    %v302 = vpop.f32.mrf.mxu0
    %v303 = vadd.f32 0.0, %v302
    %v304 = vpop.f32.mrf.mxu0
    %v305 = vpop.f32.mrf.mxu0
    %v306 = vadd.f32 0.0, %v305
    %v307 = vpop.f32.mrf.mxu0
    %308 = vdwg.mxu0
    %v309 = vpack.c.bf16 %v169, %v169
    %v310 = vpack.c.bf16 %v172, %v172
    %v311 = vpack.c.bf16 %v236, %v236
    %v312 = vpack.c.bf16 %v239, %v239
    %v313 = vpack.c.bf16 %v303, %v303
    %v314 = vpack.c.bf16 %v306, %v306
    %v316 = vsel %vm130, %v309, 0
    %v319 = vsel %vm130, %v311, 0
    %321 = vmatprep.subr.bf16.mxu0 0
    %322 = vmatpush1.bf16.xpose.msra.mxu0 0
    %323 = vmatprep.subr.bf16.mxu0 0
    %324 = vmatpush1.bf16.xpose.msra.mxu0 0
    %325 = vmatprep.subr.bf16.mxu0 0
    %326 = vmatpush1.bf16.xpose.msra.mxu0 0
    %327 = vmatprep.subr.bf16.mxu0 0
    %328 = vmatpush1.bf16.xpose.msra.mxu0 0
    %329 = vmatprep.subr.bf16.mxu0 0
    %330 = vmatpush1.bf16.xpose.msra.mxu0 0
    %331 = vmatprep.subr.bf16.mxu0 0
    %332 = vmatpush1.bf16.xpose.msra.mxu0 0
    %333 = vmatprep.subr.bf16.mxu0 0
    %334 = vmatpush1.bf16.xpose.msra.mxu0 0
    %335 = vmatprep.subr.bf16.mxu0 0
    %336 = vmatpush1.bf16.xpose.msra.mxu0 %v319
    %337 = vmatprep.subr.bf16.mxu0 0
    %338 = vmatpush2.bf16.xpose.msra.mxu0 0
    %339 = vmatprep.subr.bf16.mxu0 0
    %340 = vmatpush2.bf16.xpose.msra.mxu0 0
    %341 = vmatprep.subr.bf16.mxu0 0
    %342 = vmatpush2.bf16.xpose.msra.mxu0 0
    %343 = vmatprep.subr.bf16.mxu0 0
    %344 = vmatpush2.bf16.xpose.msra.mxu0 0
    %345 = vmatprep.subr.bf16.mxu0 0
    %346 = vmatpush2.bf16.xpose.msra.mxu0 0
    %347 = vmatprep.subr.bf16.mxu0 0
    %348 = vmatpush2.bf16.xpose.msra.mxu0 0
    %349 = vmatprep.subr.bf16.mxu0 0
    %350 = vmatpush2.bf16.xpose.msra.mxu0 0
    %351 = vmatprep.subr.bf16.mxu0 0
    %352 = vmatpush2.bf16.xpose.msra.mxu0 0
    %353 = vmatprep.mubr.bf16.mxu0 0
    %354 = vmatmul.mubr.bf16.gmra.mxu0 %v316
    %v355 = vpop.f32.mrf.mxu0
    %v356 = vadd.f32 0.0, %v355
    %v357 = vpop.f32.mrf.mxu0
    %v358 = vpop.f32.mrf.mxu0
    %v359 = vpop.f32.mrf.mxu0
    %360 = vdwg.mxu0
    %v362 = vsel %vm130, %v310, 0
    %v365 = vsel %vm130, %v312, 0
    %367 = vmatprep.subr.bf16.mxu0 0
    %368 = vmatpush1.bf16.xpose.msra.mxu0 0
    %369 = vmatprep.subr.bf16.mxu0 0
    %370 = vmatpush1.bf16.xpose.msra.mxu0 0
    %371 = vmatprep.subr.bf16.mxu0 0
    %372 = vmatpush1.bf16.xpose.msra.mxu0 0
    %373 = vmatprep.subr.bf16.mxu0 0
    %374 = vmatpush1.bf16.xpose.msra.mxu0 0
    %375 = vmatprep.subr.bf16.mxu0 0
    %376 = vmatpush1.bf16.xpose.msra.mxu0 0
    %377 = vmatprep.subr.bf16.mxu0 0
    %378 = vmatpush1.bf16.xpose.msra.mxu0 0
    %379 = vmatprep.subr.bf16.mxu0 0
    %380 = vmatpush1.bf16.xpose.msra.mxu0 0
    %381 = vmatprep.subr.bf16.mxu0 0
    %382 = vmatpush1.bf16.xpose.msra.mxu0 %v365
    %383 = vmatprep.subr.bf16.mxu0 0
    %384 = vmatpush2.bf16.xpose.msra.mxu0 0
    %385 = vmatprep.subr.bf16.mxu0 0
    %386 = vmatpush2.bf16.xpose.msra.mxu0 0
    %387 = vmatprep.subr.bf16.mxu0 0
    %388 = vmatpush2.bf16.xpose.msra.mxu0 0
    %389 = vmatprep.subr.bf16.mxu0 0
    %390 = vmatpush2.bf16.xpose.msra.mxu0 0
    %391 = vmatprep.subr.bf16.mxu0 0
    %392 = vmatpush2.bf16.xpose.msra.mxu0 0
    %393 = vmatprep.subr.bf16.mxu0 0
    %394 = vmatpush2.bf16.xpose.msra.mxu0 0
    %395 = vmatprep.subr.bf16.mxu0 0
    %396 = vmatpush2.bf16.xpose.msra.mxu0 0
    %397 = vmatprep.subr.bf16.mxu0 0
    %398 = vmatpush2.bf16.xpose.msra.mxu0 0
    %399 = vmatprep.mubr.bf16.mxu0 0
    %400 = vmatmul.mubr.bf16.gmra.mxu0 %v362
    %v401 = vpop.f32.mrf.mxu0
    %v402 = vadd.f32 0.0, %v401
    %v403 = vpop.f32.mrf.mxu0
    %v404 = vpop.f32.mrf.mxu0
    %v405 = vpop.f32.mrf.mxu0
    %406 = vdwg.mxu0
    %vm407 = vcmask 64512
    %v408 = vsel %vm407, %v356, -inf
    %409 = vmax.xlane.f32.xlu0 %v408
    %v410 = vpop.xlane.xlu0 %409
    %v411 = vsel %vm407, %v402, -inf
    %412 = vmax.xlane.f32.xlu0 %v411
    %v413 = vpop.xlane.xlu0 %412
    %v414 = vsub.f32 %v356, %v410
    %v415 = vsub.f32 %v402, %v413
    %v416 = vmul.f32 %v414, 1.442695
    %v417 = vpow.pop %v416
    %v418 = vmul.f32 %v415, 1.442695
    %v419 = vpow.pop %v418
    %v420 = vsel %vm407, %v417, 0.0
    %421 = vadd.xlane.f32.xlu0 %v420
    %v422 = vpop.xlane.xlu0 %421
    %v423 = vsel %vm407, %v419, 0.0
    %424 = vadd.xlane.f32.xlu0 %v423
    %v425 = vpop.xlane.xlu0 %424
    %v426 = vrcp.pop %v422
    %v427 = vrcp.pop %v425
    %v428 = vmul.f32 %v417, %v426
    %v429 = vmul.f32 %v419, %v427
    %v430 = vpack.c.bf16 %v428, %v428
    %v431 = vpack.c.bf16 %v429, %v429
    %v433 = vsel %vm407, %v430, 0
    %vm435 = vcmask 1043456
    %v437 = vsel %vm435, %v313, 0
    %439 = vmatprep.subr.bf16.mxu0 0
    %440 = vmatpush1.bf16.msra.mxu0 0
    %441 = vmatprep.subr.bf16.mxu0 0
    %442 = vmatpush1.bf16.msra.mxu0 0
    %443 = vmatprep.subr.bf16.mxu0 0
    %444 = vmatpush1.bf16.msra.mxu0 0
    %445 = vmatprep.subr.bf16.mxu0 0
    %446 = vmatpush1.bf16.msra.mxu0 0
    %447 = vmatprep.subr.bf16.mxu0 0
    %448 = vmatpush1.bf16.msra.mxu0 0
    %449 = vmatprep.subr.bf16.mxu0 0
    %450 = vmatpush1.bf16.msra.mxu0 0
    %451 = vmatprep.subr.bf16.mxu0 0
    %452 = vmatpush1.bf16.msra.mxu0 0
    %453 = vmatprep.subr.bf16.mxu0 0
    %454 = vmatpush1.bf16.msra.mxu0 %v437
    %455 = vmatprep.subr.bf16.mxu0 0
    %456 = vmatpush2.bf16.msra.mxu0 0
    %457 = vmatprep.subr.bf16.mxu0 0
    %458 = vmatpush2.bf16.msra.mxu0 0
    %459 = vmatprep.subr.bf16.mxu0 0
    %460 = vmatpush2.bf16.msra.mxu0 0
    %461 = vmatprep.subr.bf16.mxu0 0
    %462 = vmatpush2.bf16.msra.mxu0 0
    %463 = vmatprep.subr.bf16.mxu0 0
    %464 = vmatpush2.bf16.msra.mxu0 0
    %465 = vmatprep.subr.bf16.mxu0 0
    %466 = vmatpush2.bf16.msra.mxu0 0
    %467 = vmatprep.subr.bf16.mxu0 0
    %468 = vmatpush2.bf16.msra.mxu0 0
    %469 = vmatprep.subr.bf16.mxu0 0
    %470 = vmatpush2.bf16.msra.mxu0 0
    %471 = vmatprep.mubr.bf16.mxu0 0
    %472 = vmatmul.mubr.bf16.gmra.mxu0 %v433
    %v473 = vpop.f32.mrf.mxu0
    %v474 = vadd.f32 0.0, %v473
    %v475 = vpop.f32.mrf.mxu0
    %v476 = vpop.f32.mrf.mxu0
    %v477 = vpop.f32.mrf.mxu0
    %478 = vdwg.mxu0
    %v480 = vsel %vm407, %v431, 0
    %v483 = vsel %vm435, %v314, 0
    %485 = vmatprep.subr.bf16.mxu0 0
    %486 = vmatpush1.bf16.msra.mxu0 0
    %487 = vmatprep.subr.bf16.mxu0 0
    %488 = vmatpush1.bf16.msra.mxu0 0
    %489 = vmatprep.subr.bf16.mxu0 0
    %490 = vmatpush1.bf16.msra.mxu0 0
    %491 = vmatprep.subr.bf16.mxu0 0
    %492 = vmatpush1.bf16.msra.mxu0 0
    %493 = vmatprep.subr.bf16.mxu0 0
    %494 = vmatpush1.bf16.msra.mxu0 0
    %495 = vmatprep.subr.bf16.mxu0 0
    %496 = vmatpush1.bf16.msra.mxu0 0
    %497 = vmatprep.subr.bf16.mxu0 0
    %498 = vmatpush1.bf16.msra.mxu0 0
    %499 = vmatprep.subr.bf16.mxu0 0
    %500 = vmatpush1.bf16.msra.mxu0 %v483
    %501 = vmatprep.subr.bf16.mxu0 0
    %502 = vmatpush2.bf16.msra.mxu0 0
    %503 = vmatprep.subr.bf16.mxu0 0
    %504 = vmatpush2.bf16.msra.mxu0 0
    %505 = vmatprep.subr.bf16.mxu0 0
    %506 = vmatpush2.bf16.msra.mxu0 0
    %507 = vmatprep.subr.bf16.mxu0 0
    %508 = vmatpush2.bf16.msra.mxu0 0
    %509 = vmatprep.subr.bf16.mxu0 0
    %510 = vmatpush2.bf16.msra.mxu0 0
    %511 = vmatprep.subr.bf16.mxu0 0
    %512 = vmatpush2.bf16.msra.mxu0 0
    %513 = vmatprep.subr.bf16.mxu0 0
    %514 = vmatpush2.bf16.msra.mxu0 0
    %515 = vmatprep.subr.bf16.mxu0 0
    %516 = vmatpush2.bf16.msra.mxu0 0
    %517 = vmatprep.mubr.bf16.mxu0 0
    %518 = vmatmul.mubr.bf16.gmra.mxu0 %v480
    %v519 = vpop.f32.mrf.mxu0
    %v520 = vadd.f32 0.0, %v519
    %v521 = vpop.f32.mrf.mxu0
    %v522 = vpop.f32.mrf.mxu0
    %v523 = vpop.f32.mrf.mxu0
    %524 = vdwg.mxu0
    %v525 = vcombine.high %v474, 0.0
    %v527 = vunpack.c.l.s4 1983009808
    %v528 = vunpack.c.0.s8 %v527
    %v529 = vlaneseq
    %v530 = vshrl.u32 %v529, 7
    %v531 = vsub.s32 %v528, %v530
    %v532 = vrot.slane %v474, %v531
    %v534 = vunpack.c.l.s4 1983009808
    %v535 = vunpack.c.0.s8 %v534
    %v536 = vlaneseq
    %v537 = vshrl.u32 %v536, 7
    %v538 = vsub.s32 %v535, %v537
    %v539 = vrot.slane %v525, %v538
    %v540 = vcombine.high %v520, 0.0
    %v542 = vunpack.c.l.s4 1983009808
    %v543 = vunpack.c.0.s8 %v542
    %v544 = vlaneseq
    %v545 = vshrl.u32 %v544, 7
    %v546 = vsub.s32 %v543, %v545
    %v547 = vrot.slane %v520, %v546
    %v549 = vunpack.c.l.s4 1983009808
    %v550 = vunpack.c.0.s8 %v549
    %v551 = vlaneseq
    %v552 = vshrl.u32 %v551, 7
    %v553 = vsub.s32 %v550, %v552
    %v554 = vrot.slane %v540, %v553
    %v555 = vcombine.low %v532, %v547
    %v556 = vcombine.high %v532, %v547
    %v558 = vunpack.c.l.s4 1934713408
    %v559 = vunpack.c.0.s8 %v558
    %v560 = vlaneseq
    %v561 = vshrl.u32 %v560, 7
    %v562 = vsub.s32 %v559, %v561
    %v563 = vrot.slane %v555, %v562
    %v565 = vunpack.c.l.s4 1934713408
    %v566 = vunpack.c.0.s8 %v565
    %v567 = vlaneseq
    %v568 = vshrl.u32 %v567, 7
    %v569 = vsub.s32 %v566, %v568
    %v570 = vrot.slane %v556, %v569
    %v571 = vcombine.low %v539, %v554
    %v572 = vcombine.high %v539, %v554
    %v574 = vunpack.c.l.s4 1934713408
    %v575 = vunpack.c.0.s8 %v574
    %v576 = vlaneseq
    %v577 = vshrl.u32 %v576, 7
    %v578 = vsub.s32 %v575, %v577
    %v579 = vrot.slane %v571, %v578
    %v581 = vunpack.c.l.s4 1934713408
    %v582 = vunpack.c.0.s8 %v581
    %v583 = vlaneseq
    %v584 = vshrl.u32 %v583, 7
    %v585 = vsub.s32 %v582, %v584
    %v586 = vrot.slane %v572, %v585
    %v587 = vcombine.high %v563, 0.0
    %v588 = vcombine.high %v570, 0.0
    %v589 = vcombine.high %v579, 0.0
    %v590 = vcombine.high %v586, 0.0
    %592 = vrot.lane.b32.xlu0 %v587, 32
    %v593 = vpop.permute.xlu0 %592
    %596 = vrot.lane.b32.xlu0 %v570, 64
    %v597 = vpop.permute.xlu0 %596
    %600 = vrot.lane.b32.xlu0 %v588, 96
    %v601 = vpop.permute.xlu0 %600
    %604 = vrot.lane.b32.xlu0 %v589, 32
    %v605 = vpop.permute.xlu0 %604
    %608 = vrot.lane.b32.xlu0 %v586, 64
    %v609 = vpop.permute.xlu0 %608
    %612 = vrot.lane.b32.xlu0 %v590, 96
    %v613 = vpop.permute.xlu0 %612
    %v615 = vsel %vm130, %v563, %v593
    %vm616 = vcmask 523264
    %v617 = vsel %vm616, %v615, %v597
    %vm618 = vcmask 785408
    %v619 = vsel %vm618, %v617, %v601
    %v620 = vsel %vm130, %v579, %v605
    %v621 = vsel %vm616, %v620, %v609
    %v622 = vsel %vm618, %v621, %v613
    %v625 = vcombine.low %v619, %v622
    %v627 = vunpack.c.l.s4 1983009808
    %v628 = vunpack.c.0.s8 %v627
    %v629 = vlaneseq
    %v630 = vshrl.u32 %v629, 7
    %v631 = vsub.s32 %v628, %v630
    %v632 = vrot.slane %v625, %v631
    %634 = vst [vmem:[#allocation13] sm:$0xf] %v632
    // Predicated region
    $region50: #{tpu_custom_call.1} parent=1 // pred_check
      _
    $region51: #{tpu_custom_call.1} parent=1 // pred_check_branch
      %636 = sbr.rel (0) target = $region53
    $region52: #{tpu_custom_call.1} parent=1 // pred_region
      %s638 = ssub.s32 64, 64
      %639 = vsyncadd [#allocation4], %s638
      %s641 = sshll.u32 [#allocation13], 4
      %s642 = int_to_ptr.vmem [resolvable:$true] %s641
      %644 = dma.vmem_to_hbm [thread:$0]  %s642, 64, %s6, [#allocation4]
    $region53: #{tpu_custom_call.1} parent=1 // pred_fallthru
      _
    // Predicated region
    $region54: #{tpu_custom_call.1} parent=1 // pred_check
      _
    $region55: #{tpu_custom_call.1} parent=1 // pred_check_branch
      %646 = sbr.rel (0) target = $region57
    $region56: #{tpu_custom_call.1} parent=1 // pred_region
      %647 = dma.done [#allocation4], 64
    $region57: #{tpu_custom_call.1} parent=1 // pred_fallthru
      _
    %648 = vsyncpa [#allocation3], 1
    %649 = vsyncpa [#allocation6], 1
    %650 = vsyncpa [#allocation9], 1
    %651 = vsyncpa [#allocation12], 1
    %652 = vsyncpa [#allocation4], 1

// kernel: tpu_custom_call.1
$region0: #{tpu_custom_call.1}
  #allocation0 [shape = 'u32[]', space=smem, size = 0x4, offset = 0x4, fixed_abs, tag = 'smem constant byte address 0x4 - core index']
  #allocation1 [shape = 'u32[144,128]{1,0:T(1,128)}', space=vmem, size = 0x12000, scoped, tag = 'internal scratch']
  %s0 = inlined_call_operand.hbm [shape: bf16[16,32], index: 0, kind: input, shape index: {}]
  %s1 = inlined_call_operand.hbm [shape: bf16[16,32], index: 1, kind: input, shape index: {}]
  %s2 = inlined_call_operand.hbm [shape: bf16[16,32], index: 2, kind: input, shape index: {}]
  %s3 = inlined_call_operand.hbm [shape: bf16[32,32], index: 3, kind: input, shape index: {}]
  %s4 = inlined_call_operand.hbm [shape: bf16[32,32], index: 4, kind: input, shape index: {}]
  %s5 = inlined_call_operand.hbm [shape: bf16[32,32], index: 5, kind: input, shape index: {}]
  %s6 = inlined_call_operand.hbm [shape: f32[16,32], index: 6, kind: output, shape index: {}]
  %s7 = sld [smem:[#allocation0]]
  $region58: #{tpu_custom_call.1} parent=0
    _
  %s9 = ssub.s32 1, %s7
  %s10 = scalar_select 0, %s9, %s7
  $region1: #{tpu_custom_call.1} parent=0
    #allocation2 [shape = 'u8[4096]{0}', space=vmem, size = 0x1000, scoped, tag = 'input window, operand 0, single buffered']
    #allocation3 [shape = 's32[1]{0}', space=sflag, size = 0x4, scoped, tag = 'scoped memory for tpu_custom_call.1']
    #allocation4 [shape = 's32[1]{0}', space=sflag, size = 0x4, scoped, tag = 'scoped memory for tpu_custom_call.1']
    #allocation5 [shape = 'u8[4096]{0}', space=vmem, size = 0x1000, scoped, tag = 'input window, operand 1, single buffered']
    #allocation6 [shape = 's32[1]{0}', space=sflag, size = 0x4, scoped, tag = 'scoped memory for tpu_custom_call.1']
    #allocation7 [shape = 'u8[4096]{0}', space=vmem, size = 0x1000, scoped, tag = 'input window, operand 2, single buffered']
    #allocation8 [shape = 'u8[8192]{0}', space=vmem, size = 0x2000, scoped, tag = 'input window, operand 3, single buffered']
    #allocation9 [shape = 's32[1]{0}', space=sflag, size = 0x4, scoped, tag = 'scoped memory for tpu_custom_call.1']
    #allocation10 [shape = 'u8[8192]{0}', space=vmem, size = 0x2000, scoped, tag = 'input window, operand 4, single buffered']
    #allocation11 [shape = 'u8[8192]{0}', space=vmem, size = 0x2000, scoped, tag = 'input window, operand 5, single buffered']
    #allocation12 [shape = 's32[1]{0}', space=sflag, size = 0x4, scoped, tag = 'scoped memory for tpu_custom_call.1']
    #allocation13 [shape = 'u8[8192]{0}', space=vmem, size = 0x2000, scoped, tag = 'output window, operand 0, single buffered']
    %11 = vsyncpa [#allocation3], 0
    %12 = vsyncpa [#allocation6], 0
    %13 = vsyncpa [#allocation9], 0
    %14 = vsyncpa [#allocation12], 0
    %15 = vsyncpa [#allocation4], 0
    // Predicated region
    $region2: #{tpu_custom_call.1} parent=1 // pred_check
      _
    $region3: #{tpu_custom_call.1} parent=1 // pred_check_branch
      %17 = sbr.rel (0) target = $region5
    $region4: #{tpu_custom_call.1} parent=1 // pred_region
      %s19 = ssub.s32 128, 128
      %20 = vsyncadd [#allocation3], %s19
      %s21 = sshll.u32 [#allocation2], 4
      %s22 = int_to_ptr.vmem [resolvable:$true] %s21
      %27 = dma.hbm_to_vmem [thread:$0]  %s0, 128, %s22, [#allocation3], 64, 64, 4
    $region5: #{tpu_custom_call.1} parent=1 // pred_fallthru
      _
    // Predicated region
    $region6: #{tpu_custom_call.1} parent=1 // pred_check
      _
    $region7: #{tpu_custom_call.1} parent=1 // pred_check_branch
      %29 = sbr.rel (0) target = $region9
    $region8: #{tpu_custom_call.1} parent=1 // pred_region
      %s31 = ssub.s32 128, 128
      %32 = vsyncadd [#allocation6], %s31
      %s33 = sshll.u32 [#allocation5], 4
      %s34 = int_to_ptr.vmem [resolvable:$true] %s33
      %39 = dma.hbm_to_vmem [thread:$0]  %s1, 128, %s34, [#allocation6], 64, 64, 4
    $region9: #{tpu_custom_call.1} parent=1 // pred_fallthru
      _
    // Predicated region
    $region10: #{tpu_custom_call.1} parent=1 // pred_check
      _
    $region11: #{tpu_custom_call.1} parent=1 // pred_check_branch
      %41 = sbr.rel (0) target = $region13
    $region12: #{tpu_custom_call.1} parent=1 // pred_region
      %s43 = ssub.s32 128, 128
      %44 = vsyncadd [#allocation6], %s43
      %s45 = sshll.u32 [#allocation7], 4
      %s46 = int_to_ptr.vmem [resolvable:$true] %s45
      %51 = dma.hbm_to_vmem [thread:$0]  %s2, 128, %s46, [#allocation6], 64, 64, 4
    $region13: #{tpu_custom_call.1} parent=1 // pred_fallthru
      _
    // Predicated region
    $region14: #{tpu_custom_call.1} parent=1 // pred_check
      _
    $region15: #{tpu_custom_call.1} parent=1 // pred_check_branch
      %53 = sbr.rel (0) target = $region17
    $region16: #{tpu_custom_call.1} parent=1 // pred_region
      %s55 = ssub.s32 256, 256
      %56 = vsyncadd [#allocation9], %s55
      %s57 = sshll.u32 [#allocation8], 4
      %s58 = int_to_ptr.vmem [resolvable:$true] %s57
      %63 = dma.hbm_to_vmem [thread:$0]  %s3, 256, %s58, [#allocation9], 64, 64, 4
    $region17: #{tpu_custom_call.1} parent=1 // pred_fallthru
      _
    // Predicated region
    $region18: #{tpu_custom_call.1} parent=1 // pred_check
      _
    $region19: #{tpu_custom_call.1} parent=1 // pred_check_branch
      %65 = sbr.rel (0) target = $region21
    $region20: #{tpu_custom_call.1} parent=1 // pred_region
      %s67 = ssub.s32 256, 256
      %68 = vsyncadd [#allocation9], %s67
      %s69 = sshll.u32 [#allocation10], 4
      %s70 = int_to_ptr.vmem [resolvable:$true] %s69
      %75 = dma.hbm_to_vmem [thread:$0]  %s4, 256, %s70, [#allocation9], 64, 64, 4
    $region21: #{tpu_custom_call.1} parent=1 // pred_fallthru
      _
    // Predicated region
    $region22: #{tpu_custom_call.1} parent=1 // pred_check
      _
    $region23: #{tpu_custom_call.1} parent=1 // pred_check_branch
      %77 = sbr.rel (0) target = $region25
    $region24: #{tpu_custom_call.1} parent=1 // pred_region
      %s79 = ssub.s32 256, 256
      %80 = vsyncadd [#allocation12], %s79
      %s81 = sshll.u32 [#allocation11], 4
      %s82 = int_to_ptr.vmem [resolvable:$true] %s81
      %87 = dma.hbm_to_vmem [thread:$0]  %s5, 256, %s82, [#allocation12], 64, 64, 4
    $region25: #{tpu_custom_call.1} parent=1 // pred_fallthru
      _
    // Predicated region
    $region26: #{tpu_custom_call.1} parent=1 // pred_check
      _
    $region27: #{tpu_custom_call.1} parent=1 // pred_check_branch
      %89 = sbr.rel (0) target = $region29
    $region28: #{tpu_custom_call.1} parent=1 // pred_region
      %90 = dma.done [#allocation3], 128
    $region29: #{tpu_custom_call.1} parent=1 // pred_fallthru
      _
    // Predicated region
    $region30: #{tpu_custom_call.1} parent=1 // pred_check
      _
    $region31: #{tpu_custom_call.1} parent=1 // pred_check_branch
      %92 = sbr.rel (0) target = $region33
    $region32: #{tpu_custom_call.1} parent=1 // pred_region
      %93 = dma.done [#allocation6], 128
    $region33: #{tpu_custom_call.1} parent=1 // pred_fallthru
      _
    // Predicated region
    $region34: #{tpu_custom_call.1} parent=1 // pred_check
      _
    $region35: #{tpu_custom_call.1} parent=1 // pred_check_branch
      %95 = sbr.rel (0) target = $region37
    $region36: #{tpu_custom_call.1} parent=1 // pred_region
      %96 = dma.done [#allocation6], 128
    $region37: #{tpu_custom_call.1} parent=1 // pred_fallthru
      _
    // Predicated region
    $region38: #{tpu_custom_call.1} parent=1 // pred_check
      _
    $region39: #{tpu_custom_call.1} parent=1 // pred_check_branch
      %98 = sbr.rel (0) target = $region41
    $region40: #{tpu_custom_call.1} parent=1 // pred_region
      %99 = dma.done [#allocation9], 256
    $region41: #{tpu_custom_call.1} parent=1 // pred_fallthru
      _
    // Predicated region
    $region42: #{tpu_custom_call.1} parent=1 // pred_check
      _
    $region43: #{tpu_custom_call.1} parent=1 // pred_check_branch
      %101 = sbr.rel (0) target = $region45
    $region44: #{tpu_custom_call.1} parent=1 // pred_region
      %102 = dma.done [#allocation9], 256
    $region45: #{tpu_custom_call.1} parent=1 // pred_fallthru
      _
    // Predicated region
    $region46: #{tpu_custom_call.1} parent=1 // pred_check
      _
    $region47: #{tpu_custom_call.1} parent=1 // pred_check_branch
      %104 = sbr.rel (0) target = $region49
    $region48: #{tpu_custom_call.1} parent=1 // pred_region
      %105 = dma.done [#allocation12], 256
    $region49: #{tpu_custom_call.1} parent=1 // pred_fallthru
      _
    %v107 = vld [vmem:[#allocation2] sm:$0xf]
    %v108 = vld [vmem:[#allocation2 + $0x4] sm:$0xf]
    %v109 = vld [vmem:[#allocation8] sm:$0xf]
    %v110 = vld [vmem:[#allocation8 + $0x4] sm:$0xf]
    %v111 = vld [vmem:[#allocation8 + $0x8] sm:$0xf]
    %v112 = vld [vmem:[#allocation8 + $0xc] sm:$0xf]
    %v115 = vunpack.c.l.b16 %v107
    %v116 = vunpack.c.l.b16 %v108
    %v117 = vpack.c.b16 %v116, %v115
    %v122 = vunpack.c.l.b16 %v109
    %v123 = vunpack.c.l.b16 %v110
    %v124 = vunpack.c.l.b16 %v111
    %v125 = vunpack.c.l.b16 %v112
    %v126 = vpack.c.b16 %v123, %v122
    %v127 = vpack.c.b16 %v125, %v124
    %vm130 = vcmask 261120
    %v132 = vsel %vm130, %v117, 0
    %134 = vmatprep.subr.bf16.mxu0 0
    %135 = vmatpush1.bf16.msra.mxu0 0
    %136 = vmatprep.subr.bf16.mxu0 0
    %137 = vmatpush1.bf16.msra.mxu0 0
    %138 = vmatprep.subr.bf16.mxu0 0
    %139 = vmatpush1.bf16.msra.mxu0 0
    %140 = vmatprep.subr.bf16.mxu0 0
    %141 = vmatpush1.bf16.msra.mxu0 0
    %142 = vmatprep.subr.bf16.mxu0 0
    %143 = vmatpush1.bf16.msra.mxu0 0
    %144 = vmatprep.subr.bf16.mxu0 0
    %145 = vmatpush1.bf16.msra.mxu0 0
    %146 = vmatprep.subr.bf16.mxu0 0
    %147 = vmatpush1.bf16.msra.mxu0 %v127
    %148 = vmatprep.subr.bf16.mxu0 0
    %149 = vmatpush1.bf16.msra.mxu0 %v126
    %150 = vmatprep.subr.bf16.mxu0 0
    %151 = vmatpush2.bf16.msra.mxu0 0
    %152 = vmatprep.subr.bf16.mxu0 0
    %153 = vmatpush2.bf16.msra.mxu0 0
    %154 = vmatprep.subr.bf16.mxu0 0
    %155 = vmatpush2.bf16.msra.mxu0 0
    %156 = vmatprep.subr.bf16.mxu0 0
    %157 = vmatpush2.bf16.msra.mxu0 0
    %158 = vmatprep.subr.bf16.mxu0 0
    %159 = vmatpush2.bf16.msra.mxu0 0
    %160 = vmatprep.subr.bf16.mxu0 0
    %161 = vmatpush2.bf16.msra.mxu0 0
    %162 = vmatprep.subr.bf16.mxu0 0
    %163 = vmatpush2.bf16.msra.mxu0 0
    %164 = vmatprep.subr.bf16.mxu0 0
    %165 = vmatpush2.bf16.msra.mxu0 0
    %166 = vmatprep.mubr.bf16.mxu0 0
    %167 = vmatmul.mubr.bf16.gmra.mxu0 %v132
    %v168 = vpop.f32.mrf.mxu0
    %v169 = vadd.f32 0.0, %v168
    %v170 = vpop.f32.mrf.mxu0
    %v171 = vpop.f32.mrf.mxu0
    %v172 = vadd.f32 0.0, %v171
    %v173 = vpop.f32.mrf.mxu0
    %174 = vdwg.mxu0
    %v175 = vld [vmem:[#allocation5] sm:$0xf]
    %v176 = vld [vmem:[#allocation5 + $0x4] sm:$0xf]
    %v177 = vld [vmem:[#allocation10] sm:$0xf]
    %v178 = vld [vmem:[#allocation10 + $0x4] sm:$0xf]
    %v179 = vld [vmem:[#allocation10 + $0x8] sm:$0xf]
    %v180 = vld [vmem:[#allocation10 + $0xc] sm:$0xf]
    %v183 = vunpack.c.l.b16 %v175
    %v184 = vunpack.c.l.b16 %v176
    %v185 = vpack.c.b16 %v184, %v183
    %v190 = vunpack.c.l.b16 %v177
    %v191 = vunpack.c.l.b16 %v178
    %v192 = vunpack.c.l.b16 %v179
    %v193 = vunpack.c.l.b16 %v180
    %v194 = vpack.c.b16 %v191, %v190
    %v195 = vpack.c.b16 %v193, %v192
    %v199 = vsel %vm130, %v185, 0
    %201 = vmatprep.subr.bf16.mxu0 0
    %202 = vmatpush1.bf16.msra.mxu0 0
    %203 = vmatprep.subr.bf16.mxu0 0
    %204 = vmatpush1.bf16.msra.mxu0 0
    %205 = vmatprep.subr.bf16.mxu0 0
    %206 = vmatpush1.bf16.msra.mxu0 0
    %207 = vmatprep.subr.bf16.mxu0 0
    %208 = vmatpush1.bf16.msra.mxu0 0
    %209 = vmatprep.subr.bf16.mxu0 0
    %210 = vmatpush1.bf16.msra.mxu0 0
    %211 = vmatprep.subr.bf16.mxu0 0
    %212 = vmatpush1.bf16.msra.mxu0 0
    %213 = vmatprep.subr.bf16.mxu0 0
    %214 = vmatpush1.bf16.msra.mxu0 %v195
    %215 = vmatprep.subr.bf16.mxu0 0
    %216 = vmatpush1.bf16.msra.mxu0 %v194
    %217 = vmatprep.subr.bf16.mxu0 0
    %218 = vmatpush2.bf16.msra.mxu0 0
    %219 = vmatprep.subr.bf16.mxu0 0
    %220 = vmatpush2.bf16.msra.mxu0 0
    %221 = vmatprep.subr.bf16.mxu0 0
    %222 = vmatpush2.bf16.msra.mxu0 0
    %223 = vmatprep.subr.bf16.mxu0 0
    %224 = vmatpush2.bf16.msra.mxu0 0
    %225 = vmatprep.subr.bf16.mxu0 0
    %226 = vmatpush2.bf16.msra.mxu0 0
    %227 = vmatprep.subr.bf16.mxu0 0
    %228 = vmatpush2.bf16.msra.mxu0 0
    %229 = vmatprep.subr.bf16.mxu0 0
    %230 = vmatpush2.bf16.msra.mxu0 0
    %231 = vmatprep.subr.bf16.mxu0 0
    %232 = vmatpush2.bf16.msra.mxu0 0
    %233 = vmatprep.mubr.bf16.mxu0 0
    %234 = vmatmul.mubr.bf16.gmra.mxu0 %v199
    %v235 = vpop.f32.mrf.mxu0
    %v236 = vadd.f32 0.0, %v235
    %v237 = vpop.f32.mrf.mxu0
    %v238 = vpop.f32.mrf.mxu0
    %v239 = vadd.f32 0.0, %v238
    %v240 = vpop.f32.mrf.mxu0
    %241 = vdwg.mxu0
    %v242 = vld [vmem:[#allocation7] sm:$0xf]
    %v243 = vld [vmem:[#allocation7 + $0x4] sm:$0xf]
    %v244 = vld [vmem:[#allocation11] sm:$0xf]
    %v245 = vld [vmem:[#allocation11 + $0x4] sm:$0xf]
    %v246 = vld [vmem:[#allocation11 + $0x8] sm:$0xf]
    %v247 = vld [vmem:[#allocation11 + $0xc] sm:$0xf]
    %v250 = vunpack.c.l.b16 %v242
    %v251 = vunpack.c.l.b16 %v243
    %v252 = vpack.c.b16 %v251, %v250
    %v257 = vunpack.c.l.b16 %v244
    %v258 = vunpack.c.l.b16 %v245
    %v259 = vunpack.c.l.b16 %v246
    %v260 = vunpack.c.l.b16 %v247
    %v261 = vpack.c.b16 %v258, %v257
    %v262 = vpack.c.b16 %v260, %v259
    %v266 = vsel %vm130, %v252, 0
    %268 = vmatprep.subr.bf16.mxu0 0
    %269 = vmatpush1.bf16.msra.mxu0 0
    %270 = vmatprep.subr.bf16.mxu0 0
    %271 = vmatpush1.bf16.msra.mxu0 0
    %272 = vmatprep.subr.bf16.mxu0 0
    %273 = vmatpush1.bf16.msra.mxu0 0
    %274 = vmatprep.subr.bf16.mxu0 0
    %275 = vmatpush1.bf16.msra.mxu0 0
    %276 = vmatprep.subr.bf16.mxu0 0
    %277 = vmatpush1.bf16.msra.mxu0 0
    %278 = vmatprep.subr.bf16.mxu0 0
    %279 = vmatpush1.bf16.msra.mxu0 0
    %280 = vmatprep.subr.bf16.mxu0 0
    %281 = vmatpush1.bf16.msra.mxu0 %v262
    %282 = vmatprep.subr.bf16.mxu0 0
    %283 = vmatpush1.bf16.msra.mxu0 %v261
    %284 = vmatprep.subr.bf16.mxu0 0
    %285 = vmatpush2.bf16.msra.mxu0 0
    %286 = vmatprep.subr.bf16.mxu0 0
    %287 = vmatpush2.bf16.msra.mxu0 0
    %288 = vmatprep.subr.bf16.mxu0 0
    %289 = vmatpush2.bf16.msra.mxu0 0
    %290 = vmatprep.subr.bf16.mxu0 0
    %291 = vmatpush2.bf16.msra.mxu0 0
    %292 = vmatprep.subr.bf16.mxu0 0
    %293 = vmatpush2.bf16.msra.mxu0 0
    %294 = vmatprep.subr.bf16.mxu0 0
    %295 = vmatpush2.bf16.msra.mxu0 0
    %296 = vmatprep.subr.bf16.mxu0 0
    %297 = vmatpush2.bf16.msra.mxu0 0
    %298 = vmatprep.subr.bf16.mxu0 0
    %299 = vmatpush2.bf16.msra.mxu0 0
    %300 = vmatprep.mubr.bf16.mxu0 0
    %301 = vmatmul.mubr.bf16.gmra.mxu0 %v266
    %v302 = vpop.f32.mrf.mxu0
    %v303 = vadd.f32 0.0, %v302
    %v304 = vpop.f32.mrf.mxu0
    %v305 = vpop.f32.mrf.mxu0
    %v306 = vadd.f32 0.0, %v305
    %v307 = vpop.f32.mrf.mxu0
    %308 = vdwg.mxu0
    %v309 = vpack.c.bf16 %v169, %v169
    %v310 = vpack.c.bf16 %v172, %v172
    %v311 = vpack.c.bf16 %v236, %v236
    %v312 = vpack.c.bf16 %v239, %v239
    %v313 = vpack.c.bf16 %v303, %v303
    %v314 = vpack.c.bf16 %v306, %v306
    %v316 = vsel %vm130, %v309, 0
    %v319 = vsel %vm130, %v311, 0
    %321 = vmatprep.subr.bf16.mxu0 0
    %322 = vmatpush1.bf16.xpose.msra.mxu0 0
    %323 = vmatprep.subr.bf16.mxu0 0
    %324 = vmatpush1.bf16.xpose.msra.mxu0 0
    %325 = vmatprep.subr.bf16.mxu0 0
    %326 = vmatpush1.bf16.xpose.msra.mxu0 0
    %327 = vmatprep.subr.bf16.mxu0 0
    %328 = vmatpush1.bf16.xpose.msra.mxu0 0
    %329 = vmatprep.subr.bf16.mxu0 0
    %330 = vmatpush1.bf16.xpose.msra.mxu0 0
    %331 = vmatprep.subr.bf16.mxu0 0
    %332 = vmatpush1.bf16.xpose.msra.mxu0 0
    %333 = vmatprep.subr.bf16.mxu0 0
    %334 = vmatpush1.bf16.xpose.msra.mxu0 0
    %335 = vmatprep.subr.bf16.mxu0 0
    %336 = vmatpush1.bf16.xpose.msra.mxu0 %v319
    %337 = vmatprep.subr.bf16.mxu0 0
    %338 = vmatpush2.bf16.xpose.msra.mxu0 0
    %339 = vmatprep.subr.bf16.mxu0 0
    %340 = vmatpush2.bf16.xpose.msra.mxu0 0
    %341 = vmatprep.subr.bf16.mxu0 0
    %342 = vmatpush2.bf16.xpose.msra.mxu0 0
    %343 = vmatprep.subr.bf16.mxu0 0
    %344 = vmatpush2.bf16.xpose.msra.mxu0 0
    %345 = vmatprep.subr.bf16.mxu0 0
    %346 = vmatpush2.bf16.xpose.msra.mxu0 0
    %347 = vmatprep.subr.bf16.mxu0 0
    %348 = vmatpush2.bf16.xpose.msra.mxu0 0
    %349 = vmatprep.subr.bf16.mxu0 0
    %350 = vmatpush2.bf16.xpose.msra.mxu0 0
    %351 = vmatprep.subr.bf16.mxu0 0
    %352 = vmatpush2.bf16.xpose.msra.mxu0 0
    %353 = vmatprep.mubr.bf16.mxu0 0
    %354 = vmatmul.mubr.bf16.gmra.mxu0 %v316
    %v355 = vpop.f32.mrf.mxu0
    %v356 = vadd.f32 0.0, %v355
    %v357 = vpop.f32.mrf.mxu0
    %v358 = vpop.f32.mrf.mxu0
    %v359 = vpop.f32.mrf.mxu0
    %360 = vdwg.mxu0
    %v362 = vsel %vm130, %v310, 0
    %v365 = vsel %vm130, %v312, 0
    %367 = vmatprep.subr.bf16.mxu0 0
    %368 = vmatpush1.bf16.xpose.msra.mxu0 0
    %369 = vmatprep.subr.bf16.mxu0 0
    %370 = vmatpush1.bf16.xpose.msra.mxu0 0
    %371 = vmatprep.subr.bf16.mxu0 0
    %372 = vmatpush1.bf16.xpose.msra.mxu0 0
    %373 = vmatprep.subr.bf16.mxu0 0
    %374 = vmatpush1.bf16.xpose.msra.mxu0 0
    %375 = vmatprep.subr.bf16.mxu0 0
    %376 = vmatpush1.bf16.xpose.msra.mxu0 0
    %377 = vmatprep.subr.bf16.mxu0 0
    %378 = vmatpush1.bf16.xpose.msra.mxu0 0
    %379 = vmatprep.subr.bf16.mxu0 0
    %380 = vmatpush1.bf16.xpose.msra.mxu0 0
    %381 = vmatprep.subr.bf16.mxu0 0
    %382 = vmatpush1.bf16.xpose.msra.mxu0 %v365
    %383 = vmatprep.subr.bf16.mxu0 0
    %384 = vmatpush2.bf16.xpose.msra.mxu0 0
    %385 = vmatprep.subr.bf16.mxu0 0
    %386 = vmatpush2.bf16.xpose.msra.mxu0 0
    %387 = vmatprep.subr.bf16.mxu0 0
    %388 = vmatpush2.bf16.xpose.msra.mxu0 0
    %389 = vmatprep.subr.bf16.mxu0 0
    %390 = vmatpush2.bf16.xpose.msra.mxu0 0
    %391 = vmatprep.subr.bf16.mxu0 0
    %392 = vmatpush2.bf16.xpose.msra.mxu0 0
    %393 = vmatprep.subr.bf16.mxu0 0
    %394 = vmatpush2.bf16.xpose.msra.mxu0 0
    %395 = vmatprep.subr.bf16.mxu0 0
    %396 = vmatpush2.bf16.xpose.msra.mxu0 0
    %397 = vmatprep.subr.bf16.mxu0 0
    %398 = vmatpush2.bf16.xpose.msra.mxu0 0
    %399 = vmatprep.mubr.bf16.mxu0 0
    %400 = vmatmul.mubr.bf16.gmra.mxu0 %v362
    %v401 = vpop.f32.mrf.mxu0
    %v402 = vadd.f32 0.0, %v401
    %v403 = vpop.f32.mrf.mxu0
    %v404 = vpop.f32.mrf.mxu0
    %v405 = vpop.f32.mrf.mxu0
    %406 = vdwg.mxu0
    %vm407 = vcmask 64512
    %v408 = vsel %vm407, %v356, -inf
    %409 = vmax.xlane.f32.xlu0 %v408
    %v410 = vpop.xlane.xlu0 %409
    %v411 = vsel %vm407, %v402, -inf
    %412 = vmax.xlane.f32.xlu0 %v411
    %v413 = vpop.xlane.xlu0 %412
    %v414 = vsub.f32 %v356, %v410
    %v415 = vsub.f32 %v402, %v413
    %v416 = vmul.f32 %v414, 1.442695
    %v417 = vpow.pop %v416
    %v418 = vmul.f32 %v415, 1.442695
    %v419 = vpow.pop %v418
    %v420 = vsel %vm407, %v417, 0.0
    %421 = vadd.xlane.f32.xlu0 %v420
    %v422 = vpop.xlane.xlu0 %421
    %v423 = vsel %vm407, %v419, 0.0
    %424 = vadd.xlane.f32.xlu0 %v423
    %v425 = vpop.xlane.xlu0 %424
    %v426 = vrcp.pop %v422
    %v427 = vrcp.pop %v425
    %v428 = vmul.f32 %v417, %v426
    %v429 = vmul.f32 %v419, %v427
    %v430 = vpack.c.bf16 %v428, %v428
    %v431 = vpack.c.bf16 %v429, %v429
    %v433 = vsel %vm407, %v430, 0
    %vm435 = vcmask 1043456
    %v437 = vsel %vm435, %v313, 0
    %439 = vmatprep.subr.bf16.mxu0 0
    %440 = vmatpush1.bf16.msra.mxu0 0
    %441 = vmatprep.subr.bf16.mxu0 0
    %442 = vmatpush1.bf16.msra.mxu0 0
    %443 = vmatprep.subr.bf16.mxu0 0
    %444 = vmatpush1.bf16.msra.mxu0 0
    %445 = vmatprep.subr.bf16.mxu0 0
    %446 = vmatpush1.bf16.msra.mxu0 0
    %447 = vmatprep.subr.bf16.mxu0 0
    %448 = vmatpush1.bf16.msra.mxu0 0
    %449 = vmatprep.subr.bf16.mxu0 0
    %450 = vmatpush1.bf16.msra.mxu0 0
    %451 = vmatprep.subr.bf16.mxu0 0
    %452 = vmatpush1.bf16.msra.mxu0 0
    %453 = vmatprep.subr.bf16.mxu0 0
    %454 = vmatpush1.bf16.msra.mxu0 %v437
    %455 = vmatprep.subr.bf16.mxu0 0
    %456 = vmatpush2.bf16.msra.mxu0 0
    %457 = vmatprep.subr.bf16.mxu0 0
    %458 = vmatpush2.bf16.msra.mxu0 0
    %459 = vmatprep.subr.bf16.mxu0 0
    %460 = vmatpush2.bf16.msra.mxu0 0
    %461 = vmatprep.subr.bf16.mxu0 0
    %462 = vmatpush2.bf16.msra.mxu0 0
    %463 = vmatprep.subr.bf16.mxu0 0
    %464 = vmatpush2.bf16.msra.mxu0 0
    %465 = vmatprep.subr.bf16.mxu0 0
    %466 = vmatpush2.bf16.msra.mxu0 0
    %467 = vmatprep.subr.bf16.mxu0 0
    %468 = vmatpush2.bf16.msra.mxu0 0
    %469 = vmatprep.subr.bf16.mxu0 0
    %470 = vmatpush2.bf16.msra.mxu0 0
    %471 = vmatprep.mubr.bf16.mxu0 0
    %472 = vmatmul.mubr.bf16.gmra.mxu0 %v433
    %v473 = vpop.f32.mrf.mxu0
    %v474 = vadd.f32 0.0, %v473
    %v475 = vpop.f32.mrf.mxu0
    %v476 = vpop.f32.mrf.mxu0
    %v477 = vpop.f32.mrf.mxu0
    %478 = vdwg.mxu0
    %v480 = vsel %vm407, %v431, 0
    %v483 = vsel %vm435, %v314, 0
    %485 = vmatprep.subr.bf16.mxu0 0
    %486 = vmatpush1.bf16.msra.mxu0 0
    %487 = vmatprep.subr.bf16.mxu0 0
    %488 = vmatpush1.bf16.msra.mxu0 0
    %489 = vmatprep.subr.bf16.mxu0 0
    %490 = vmatpush1.bf16.msra.mxu0 0
    %491 = vmatprep.subr.bf16.mxu0 0
    %492 = vmatpush1.bf16.msra.mxu0 0
    %493 = vmatprep.subr.bf16.mxu0 0
    %494 = vmatpush1.bf16.msra.mxu0 0
    %495 = vmatprep.subr.bf16.mxu0 0
    %496 = vmatpush1.bf16.msra.mxu0 0
    %497 = vmatprep.subr.bf16.mxu0 0
    %498 = vmatpush1.bf16.msra.mxu0 0
    %499 = vmatprep.subr.bf16.mxu0 0
    %500 = vmatpush1.bf16.msra.mxu0 %v483
    %501 = vmatprep.subr.bf16.mxu0 0
    %502 = vmatpush2.bf16.msra.mxu0 0
    %503 = vmatprep.subr.bf16.mxu0 0
    %504 = vmatpush2.bf16.msra.mxu0 0
    %505 = vmatprep.subr.bf16.mxu0 0
    %506 = vmatpush2.bf16.msra.mxu0 0
    %507 = vmatprep.subr.bf16.mxu0 0
    %508 = vmatpush2.bf16.msra.mxu0 0
    %509 = vmatprep.subr.bf16.mxu0 0
    %510 = vmatpush2.bf16.msra.mxu0 0
    %511 = vmatprep.subr.bf16.mxu0 0
    %512 = vmatpush2.bf16.msra.mxu0 0
    %513 = vmatprep.subr.bf16.mxu0 0
    %514 = vmatpush2.bf16.msra.mxu0 0
    %515 = vmatprep.subr.bf16.mxu0 0
    %516 = vmatpush2.bf16.msra.mxu0 0
    %517 = vmatprep.mubr.bf16.mxu0 0
    %518 = vmatmul.mubr.bf16.gmra.mxu0 %v480
    %v519 = vpop.f32.mrf.mxu0
    %v520 = vadd.f32 0.0, %v519
    %v521 = vpop.f32.mrf.mxu0
    %v522 = vpop.f32.mrf.mxu0
    %v523 = vpop.f32.mrf.mxu0
    %524 = vdwg.mxu0
    %525 = vst.msk [vmem:[#allocation13] sm:$0xff] %vm130, %v474
    %526 = vst.msk [vmem:[#allocation13 + $0x8] sm:$0xff] %vm130, %v520
    // Predicated region
    $region50: #{tpu_custom_call.1} parent=1 // pred_check
      _
    $region51: #{tpu_custom_call.1} parent=1 // pred_check_branch
      %528 = sbr.rel (0) target = $region53
    $region52: #{tpu_custom_call.1} parent=1 // pred_region
      %s530 = ssub.s32 256, 256
      %531 = vsyncadd [#allocation4], %s530
      %s532 = sshll.u32 [#allocation13], 4
      %s533 = int_to_ptr.vmem [resolvable:$true] %s532
      %538 = dma.vmem_to_hbm [thread:$0]  %s533, 256, %s6, [#allocation4], 128, 128, 8
    $region53: #{tpu_custom_call.1} parent=1 // pred_fallthru
      _
    // Predicated region
    $region54: #{tpu_custom_call.1} parent=1 // pred_check
      _
    $region55: #{tpu_custom_call.1} parent=1 // pred_check_branch
      %540 = sbr.rel (0) target = $region57
    $region56: #{tpu_custom_call.1} parent=1 // pred_region
      %541 = dma.done [#allocation4], 256
    $region57: #{tpu_custom_call.1} parent=1 // pred_fallthru
      _
    %542 = vsyncpa [#allocation3], 1
    %543 = vsyncpa [#allocation6], 1
    %544 = vsyncpa [#allocation9], 1
    %545 = vsyncpa [#allocation12], 1
    %546 = vsyncpa [#allocation4], 1

// kernel: tpu_custom_call.1
$region0: #{tpu_custom_call.1}
  #allocation0 [shape = 'u32[]', space=smem, size = 0x4, offset = 0x4, fixed_abs, tag = 'smem constant byte address 0x4 - core index']
  #allocation1 [shape = 'u32[144,128]{1,0:T(1,128)}', space=vmem, size = 0x12000, scoped, tag = 'internal scratch']
  %s0 = inlined_call_operand.hbm [shape: bf16[16,32], index: 0, kind: input, shape index: {}]
  %s1 = inlined_call_operand.hbm [shape: bf16[16,32], index: 1, kind: input, shape index: {}]
  %s2 = inlined_call_operand.hbm [shape: bf16[16,32], index: 2, kind: input, shape index: {}]
  %s3 = inlined_call_operand.hbm [shape: bf16[32,32], index: 3, kind: input, shape index: {}]
  %s4 = inlined_call_operand.hbm [shape: bf16[32,32], index: 4, kind: input, shape index: {}]
  %s5 = inlined_call_operand.hbm [shape: bf16[32,32], index: 5, kind: input, shape index: {}]
  %s6 = inlined_call_operand.hbm [shape: f32[16,32], index: 6, kind: output, shape index: {}]
  %s7 = sld [smem:[#allocation0]]
  $region58: #{tpu_custom_call.1} parent=0
    _
  %s9 = ssub.s32 1, %s7
  %s10 = scalar_select 0, %s9, %s7
  $region1: #{tpu_custom_call.1} parent=0
    #allocation2 [shape = 'u8[4096]{0}', space=vmem, size = 0x1000, scoped, tag = 'input window, operand 0, single buffered']
    #allocation3 [shape = 's32[1]{0}', space=sflag, size = 0x4, scoped, tag = 'scoped memory for tpu_custom_call.1']
    #allocation4 [shape = 's32[1]{0}', space=sflag, size = 0x4, scoped, tag = 'scoped memory for tpu_custom_call.1']
    #allocation5 [shape = 'u8[4096]{0}', space=vmem, size = 0x1000, scoped, tag = 'input window, operand 1, single buffered']
    #allocation6 [shape = 's32[1]{0}', space=sflag, size = 0x4, scoped, tag = 'scoped memory for tpu_custom_call.1']
    #allocation7 [shape = 'u8[4096]{0}', space=vmem, size = 0x1000, scoped, tag = 'input window, operand 2, single buffered']
    #allocation8 [shape = 'u8[8192]{0}', space=vmem, size = 0x2000, scoped, tag = 'input window, operand 3, single buffered']
    #allocation9 [shape = 's32[1]{0}', space=sflag, size = 0x4, scoped, tag = 'scoped memory for tpu_custom_call.1']
    #allocation10 [shape = 'u8[8192]{0}', space=vmem, size = 0x2000, scoped, tag = 'input window, operand 4, single buffered']
    #allocation11 [shape = 'u8[8192]{0}', space=vmem, size = 0x2000, scoped, tag = 'input window, operand 5, single buffered']
    #allocation12 [shape = 's32[1]{0}', space=sflag, size = 0x4, scoped, tag = 'scoped memory for tpu_custom_call.1']
    #allocation13 [shape = 'u8[8192]{0}', space=vmem, size = 0x2000, scoped, tag = 'output window, operand 0, single buffered']
    %11 = vsyncpa [#allocation3], 0
    %12 = vsyncpa [#allocation6], 0
    %13 = vsyncpa [#allocation9], 0
    %14 = vsyncpa [#allocation12], 0
    %15 = vsyncpa [#allocation4], 0
    // Predicated region
    $region2: #{tpu_custom_call.1} parent=1 // pred_check
      _
    $region3: #{tpu_custom_call.1} parent=1 // pred_check_branch
      %17 = sbr.rel (0) target = $region5
    $region4: #{tpu_custom_call.1} parent=1 // pred_region
      %s19 = ssub.s32 128, 128
      %20 = vsyncadd [#allocation3], %s19
      %s21 = sshll.u32 [#allocation2], 4
      %s22 = int_to_ptr.vmem [resolvable:$true] %s21
      %27 = dma.hbm_to_vmem [thread:$0]  %s0, 128, %s22, [#allocation3], 64, 64, 4
    $region5: #{tpu_custom_call.1} parent=1 // pred_fallthru
      _
    // Predicated region
    $region6: #{tpu_custom_call.1} parent=1 // pred_check
      _
    $region7: #{tpu_custom_call.1} parent=1 // pred_check_branch
      %29 = sbr.rel (0) target = $region9
    $region8: #{tpu_custom_call.1} parent=1 // pred_region
      %s31 = ssub.s32 128, 128
      %32 = vsyncadd [#allocation6], %s31
      %s33 = sshll.u32 [#allocation5], 4
      %s34 = int_to_ptr.vmem [resolvable:$true] %s33
      %39 = dma.hbm_to_vmem [thread:$0]  %s1, 128, %s34, [#allocation6], 64, 64, 4
    $region9: #{tpu_custom_call.1} parent=1 // pred_fallthru
      _
    // Predicated region
    $region10: #{tpu_custom_call.1} parent=1 // pred_check
      _
    $region11: #{tpu_custom_call.1} parent=1 // pred_check_branch
      %41 = sbr.rel (0) target = $region13
    $region12: #{tpu_custom_call.1} parent=1 // pred_region
      %s43 = ssub.s32 128, 128
      %44 = vsyncadd [#allocation6], %s43
      %s45 = sshll.u32 [#allocation7], 4
      %s46 = int_to_ptr.vmem [resolvable:$true] %s45
      %51 = dma.hbm_to_vmem [thread:$0]  %s2, 128, %s46, [#allocation6], 64, 64, 4
    $region13: #{tpu_custom_call.1} parent=1 // pred_fallthru
      _
    // Predicated region
    $region14: #{tpu_custom_call.1} parent=1 // pred_check
      _
    $region15: #{tpu_custom_call.1} parent=1 // pred_check_branch
      %53 = sbr.rel (0) target = $region17
    $region16: #{tpu_custom_call.1} parent=1 // pred_region
      %s55 = ssub.s32 256, 256
      %56 = vsyncadd [#allocation9], %s55
      %s57 = sshll.u32 [#allocation8], 4
      %s58 = int_to_ptr.vmem [resolvable:$true] %s57
      %63 = dma.hbm_to_vmem [thread:$0]  %s3, 256, %s58, [#allocation9], 64, 64, 4
    $region17: #{tpu_custom_call.1} parent=1 // pred_fallthru
      _
    // Predicated region
    $region18: #{tpu_custom_call.1} parent=1 // pred_check
      _
    $region19: #{tpu_custom_call.1} parent=1 // pred_check_branch
      %65 = sbr.rel (0) target = $region21
    $region20: #{tpu_custom_call.1} parent=1 // pred_region
      %s67 = ssub.s32 256, 256
      %68 = vsyncadd [#allocation9], %s67
      %s69 = sshll.u32 [#allocation10], 4
      %s70 = int_to_ptr.vmem [resolvable:$true] %s69
      %75 = dma.hbm_to_vmem [thread:$0]  %s4, 256, %s70, [#allocation9], 64, 64, 4
    $region21: #{tpu_custom_call.1} parent=1 // pred_fallthru
      _
    // Predicated region
    $region22: #{tpu_custom_call.1} parent=1 // pred_check
      _
    $region23: #{tpu_custom_call.1} parent=1 // pred_check_branch
      %77 = sbr.rel (0) target = $region25
    $region24: #{tpu_custom_call.1} parent=1 // pred_region
      %s79 = ssub.s32 256, 256
      %80 = vsyncadd [#allocation12], %s79
      %s81 = sshll.u32 [#allocation11], 4
      %s82 = int_to_ptr.vmem [resolvable:$true] %s81
      %87 = dma.hbm_to_vmem [thread:$0]  %s5, 256, %s82, [#allocation12], 64, 64, 4
    $region25: #{tpu_custom_call.1} parent=1 // pred_fallthru
      _
    // Predicated region
    $region26: #{tpu_custom_call.1} parent=1 // pred_check
      _
    $region27: #{tpu_custom_call.1} parent=1 // pred_check_branch
      %89 = sbr.rel (0) target = $region29
    $region28: #{tpu_custom_call.1} parent=1 // pred_region
      %90 = dma.done [#allocation3], 128
    $region29: #{tpu_custom_call.1} parent=1 // pred_fallthru
      _
    // Predicated region
    $region30: #{tpu_custom_call.1} parent=1 // pred_check
      _
    $region31: #{tpu_custom_call.1} parent=1 // pred_check_branch
      %92 = sbr.rel (0) target = $region33
    $region32: #{tpu_custom_call.1} parent=1 // pred_region
      %93 = dma.done [#allocation6], 128
    $region33: #{tpu_custom_call.1} parent=1 // pred_fallthru
      _
    // Predicated region
    $region34: #{tpu_custom_call.1} parent=1 // pred_check
      _
    $region35: #{tpu_custom_call.1} parent=1 // pred_check_branch
      %95 = sbr.rel (0) target = $region37
    $region36: #{tpu_custom_call.1} parent=1 // pred_region
      %96 = dma.done [#allocation6], 128
    $region37: #{tpu_custom_call.1} parent=1 // pred_fallthru
      _
    // Predicated region
    $region38: #{tpu_custom_call.1} parent=1 // pred_check
      _
    $region39: #{tpu_custom_call.1} parent=1 // pred_check_branch
      %98 = sbr.rel (0) target = $region41
    $region40: #{tpu_custom_call.1} parent=1 // pred_region
      %99 = dma.done [#allocation9], 256
    $region41: #{tpu_custom_call.1} parent=1 // pred_fallthru
      _
    // Predicated region
    $region42: #{tpu_custom_call.1} parent=1 // pred_check
      _
    $region43: #{tpu_custom_call.1} parent=1 // pred_check_branch
      %101 = sbr.rel (0) target = $region45
    $region44: #{tpu_custom_call.1} parent=1 // pred_region
      %102 = dma.done [#allocation9], 256
    $region45: #{tpu_custom_call.1} parent=1 // pred_fallthru
      _
    // Predicated region
    $region46: #{tpu_custom_call.1} parent=1 // pred_check
      _
    $region47: #{tpu_custom_call.1} parent=1 // pred_check_branch
      %104 = sbr.rel (0) target = $region49
    $region48: #{tpu_custom_call.1} parent=1 // pred_region
      %105 = dma.done [#allocation12], 256
    $region49: #{tpu_custom_call.1} parent=1 // pred_fallthru
      _
    %v107 = vld [vmem:[#allocation2] sm:$0xf]
    %v108 = vld [vmem:[#allocation2 + $0x4] sm:$0xf]
    %v109 = vld [vmem:[#allocation8] sm:$0xf]
    %v110 = vld [vmem:[#allocation8 + $0x4] sm:$0xf]
    %v111 = vld [vmem:[#allocation8 + $0x8] sm:$0xf]
    %v112 = vld [vmem:[#allocation8 + $0xc] sm:$0xf]
    %v115 = vunpack.c.l.b16 %v107
    %v116 = vunpack.c.l.b16 %v108
    %v117 = vpack.c.b16 %v116, %v115
    %v122 = vunpack.c.l.b16 %v109
    %v123 = vunpack.c.l.b16 %v110
    %v124 = vunpack.c.l.b16 %v111
    %v125 = vunpack.c.l.b16 %v112
    %v126 = vpack.c.b16 %v123, %v122
    %v127 = vpack.c.b16 %v125, %v124
    %vm130 = vcmask 261120
    %v132 = vsel %vm130, %v117, 0
    %134 = vmatprep.subr.bf16.mxu0 0
    %135 = vmatpush1.bf16.msra.mxu0 0
    %136 = vmatprep.subr.bf16.mxu0 0
    %137 = vmatpush1.bf16.msra.mxu0 0
    %138 = vmatprep.subr.bf16.mxu0 0
    %139 = vmatpush1.bf16.msra.mxu0 0
    %140 = vmatprep.subr.bf16.mxu0 0
    %141 = vmatpush1.bf16.msra.mxu0 0
    %142 = vmatprep.subr.bf16.mxu0 0
    %143 = vmatpush1.bf16.msra.mxu0 0
    %144 = vmatprep.subr.bf16.mxu0 0
    %145 = vmatpush1.bf16.msra.mxu0 0
    %146 = vmatprep.subr.bf16.mxu0 0
    %147 = vmatpush1.bf16.msra.mxu0 %v127
    %148 = vmatprep.subr.bf16.mxu0 0
    %149 = vmatpush1.bf16.msra.mxu0 %v126
    %150 = vmatprep.subr.bf16.mxu0 0
    %151 = vmatpush2.bf16.msra.mxu0 0
    %152 = vmatprep.subr.bf16.mxu0 0
    %153 = vmatpush2.bf16.msra.mxu0 0
    %154 = vmatprep.subr.bf16.mxu0 0
    %155 = vmatpush2.bf16.msra.mxu0 0
    %156 = vmatprep.subr.bf16.mxu0 0
    %157 = vmatpush2.bf16.msra.mxu0 0
    %158 = vmatprep.subr.bf16.mxu0 0
    %159 = vmatpush2.bf16.msra.mxu0 0
    %160 = vmatprep.subr.bf16.mxu0 0
    %161 = vmatpush2.bf16.msra.mxu0 0
    %162 = vmatprep.subr.bf16.mxu0 0
    %163 = vmatpush2.bf16.msra.mxu0 0
    %164 = vmatprep.subr.bf16.mxu0 0
    %165 = vmatpush2.bf16.msra.mxu0 0
    %166 = vmatprep.mubr.bf16.mxu0 0
    %167 = vmatmul.mubr.bf16.gmra.mxu0 %v132
    %v168 = vpop.f32.mrf.mxu0
    %v169 = vadd.f32 0.0, %v168
    %v170 = vpop.f32.mrf.mxu0
    %v171 = vpop.f32.mrf.mxu0
    %v172 = vadd.f32 0.0, %v171
    %v173 = vpop.f32.mrf.mxu0
    %174 = vdwg.mxu0
    %v175 = vld [vmem:[#allocation5] sm:$0xf]
    %v176 = vld [vmem:[#allocation5 + $0x4] sm:$0xf]
    %v177 = vld [vmem:[#allocation10] sm:$0xf]
    %v178 = vld [vmem:[#allocation10 + $0x4] sm:$0xf]
    %v179 = vld [vmem:[#allocation10 + $0x8] sm:$0xf]
    %v180 = vld [vmem:[#allocation10 + $0xc] sm:$0xf]
    %v183 = vunpack.c.l.b16 %v175
    %v184 = vunpack.c.l.b16 %v176
    %v185 = vpack.c.b16 %v184, %v183
    %v190 = vunpack.c.l.b16 %v177
    %v191 = vunpack.c.l.b16 %v178
    %v192 = vunpack.c.l.b16 %v179
    %v193 = vunpack.c.l.b16 %v180
    %v194 = vpack.c.b16 %v191, %v190
    %v195 = vpack.c.b16 %v193, %v192
    %v199 = vsel %vm130, %v185, 0
    %201 = vmatprep.subr.bf16.mxu0 0
    %202 = vmatpush1.bf16.msra.mxu0 0
    %203 = vmatprep.subr.bf16.mxu0 0
    %204 = vmatpush1.bf16.msra.mxu0 0
    %205 = vmatprep.subr.bf16.mxu0 0
    %206 = vmatpush1.bf16.msra.mxu0 0
    %207 = vmatprep.subr.bf16.mxu0 0
    %208 = vmatpush1.bf16.msra.mxu0 0
    %209 = vmatprep.subr.bf16.mxu0 0
    %210 = vmatpush1.bf16.msra.mxu0 0
    %211 = vmatprep.subr.bf16.mxu0 0
    %212 = vmatpush1.bf16.msra.mxu0 0
    %213 = vmatprep.subr.bf16.mxu0 0
    %214 = vmatpush1.bf16.msra.mxu0 %v195
    %215 = vmatprep.subr.bf16.mxu0 0
    %216 = vmatpush1.bf16.msra.mxu0 %v194
    %217 = vmatprep.subr.bf16.mxu0 0
    %218 = vmatpush2.bf16.msra.mxu0 0
    %219 = vmatprep.subr.bf16.mxu0 0
    %220 = vmatpush2.bf16.msra.mxu0 0
    %221 = vmatprep.subr.bf16.mxu0 0
    %222 = vmatpush2.bf16.msra.mxu0 0
    %223 = vmatprep.subr.bf16.mxu0 0
    %224 = vmatpush2.bf16.msra.mxu0 0
    %225 = vmatprep.subr.bf16.mxu0 0
    %226 = vmatpush2.bf16.msra.mxu0 0
    %227 = vmatprep.subr.bf16.mxu0 0
    %228 = vmatpush2.bf16.msra.mxu0 0
    %229 = vmatprep.subr.bf16.mxu0 0
    %230 = vmatpush2.bf16.msra.mxu0 0
    %231 = vmatprep.subr.bf16.mxu0 0
    %232 = vmatpush2.bf16.msra.mxu0 0
    %233 = vmatprep.mubr.bf16.mxu0 0
    %234 = vmatmul.mubr.bf16.gmra.mxu0 %v199
    %v235 = vpop.f32.mrf.mxu0
    %v236 = vadd.f32 0.0, %v235
    %v237 = vpop.f32.mrf.mxu0
    %v238 = vpop.f32.mrf.mxu0
    %v239 = vadd.f32 0.0, %v238
    %v240 = vpop.f32.mrf.mxu0
    %241 = vdwg.mxu0
    %v242 = vld [vmem:[#allocation7] sm:$0xf]
    %v243 = vld [vmem:[#allocation7 + $0x4] sm:$0xf]
    %v244 = vld [vmem:[#allocation11] sm:$0xf]
    %v245 = vld [vmem:[#allocation11 + $0x4] sm:$0xf]
    %v246 = vld [vmem:[#allocation11 + $0x8] sm:$0xf]
    %v247 = vld [vmem:[#allocation11 + $0xc] sm:$0xf]
    %v250 = vunpack.c.l.b16 %v242
    %v251 = vunpack.c.l.b16 %v243
    %v252 = vpack.c.b16 %v251, %v250
    %v257 = vunpack.c.l.b16 %v244
    %v258 = vunpack.c.l.b16 %v245
    %v259 = vunpack.c.l.b16 %v246
    %v260 = vunpack.c.l.b16 %v247
    %v261 = vpack.c.b16 %v258, %v257
    %v262 = vpack.c.b16 %v260, %v259
    %v266 = vsel %vm130, %v252, 0
    %268 = vmatprep.subr.bf16.mxu0 0
    %269 = vmatpush1.bf16.msra.mxu0 0
    %270 = vmatprep.subr.bf16.mxu0 0
    %271 = vmatpush1.bf16.msra.mxu0 0
    %272 = vmatprep.subr.bf16.mxu0 0
    %273 = vmatpush1.bf16.msra.mxu0 0
    %274 = vmatprep.subr.bf16.mxu0 0
    %275 = vmatpush1.bf16.msra.mxu0 0
    %276 = vmatprep.subr.bf16.mxu0 0
    %277 = vmatpush1.bf16.msra.mxu0 0
    %278 = vmatprep.subr.bf16.mxu0 0
    %279 = vmatpush1.bf16.msra.mxu0 0
    %280 = vmatprep.subr.bf16.mxu0 0
    %281 = vmatpush1.bf16.msra.mxu0 %v262
    %282 = vmatprep.subr.bf16.mxu0 0
    %283 = vmatpush1.bf16.msra.mxu0 %v261
    %284 = vmatprep.subr.bf16.mxu0 0
    %285 = vmatpush2.bf16.msra.mxu0 0
    %286 = vmatprep.subr.bf16.mxu0 0
    %287 = vmatpush2.bf16.msra.mxu0 0
    %288 = vmatprep.subr.bf16.mxu0 0
    %289 = vmatpush2.bf16.msra.mxu0 0
    %290 = vmatprep.subr.bf16.mxu0 0
    %291 = vmatpush2.bf16.msra.mxu0 0
    %292 = vmatprep.subr.bf16.mxu0 0
    %293 = vmatpush2.bf16.msra.mxu0 0
    %294 = vmatprep.subr.bf16.mxu0 0
    %295 = vmatpush2.bf16.msra.mxu0 0
    %296 = vmatprep.subr.bf16.mxu0 0
    %297 = vmatpush2.bf16.msra.mxu0 0
    %298 = vmatprep.subr.bf16.mxu0 0
    %299 = vmatpush2.bf16.msra.mxu0 0
    %300 = vmatprep.mubr.bf16.mxu0 0
    %301 = vmatmul.mubr.bf16.gmra.mxu0 %v266
    %v302 = vpop.f32.mrf.mxu0
    %v303 = vadd.f32 0.0, %v302
    %v304 = vpop.f32.mrf.mxu0
    %v305 = vpop.f32.mrf.mxu0
    %v306 = vadd.f32 0.0, %v305
    %v307 = vpop.f32.mrf.mxu0
    %308 = vdwg.mxu0
    %v309 = vpack.c.bf16 %v169, %v169
    %v310 = vpack.c.bf16 %v172, %v172
    %v311 = vpack.c.bf16 %v236, %v236
    %v312 = vpack.c.bf16 %v239, %v239
    %v313 = vpack.c.bf16 %v303, %v303
    %v314 = vpack.c.bf16 %v306, %v306
    %v316 = vsel %vm130, %v309, 0
    %v319 = vsel %vm130, %v311, 0
    %321 = vmatprep.subr.bf16.mxu0 0
    %322 = vmatpush1.bf16.xpose.msra.mxu0 0
    %323 = vmatprep.subr.bf16.mxu0 0
    %324 = vmatpush1.bf16.xpose.msra.mxu0 0
    %325 = vmatprep.subr.bf16.mxu0 0
    %326 = vmatpush1.bf16.xpose.msra.mxu0 0
    %327 = vmatprep.subr.bf16.mxu0 0
    %328 = vmatpush1.bf16.xpose.msra.mxu0 0
    %329 = vmatprep.subr.bf16.mxu0 0
    %330 = vmatpush1.bf16.xpose.msra.mxu0 0
    %331 = vmatprep.subr.bf16.mxu0 0
    %332 = vmatpush1.bf16.xpose.msra.mxu0 0
    %333 = vmatprep.subr.bf16.mxu0 0
    %334 = vmatpush1.bf16.xpose.msra.mxu0 0
    %335 = vmatprep.subr.bf16.mxu0 0
    %336 = vmatpush1.bf16.xpose.msra.mxu0 %v319
    %337 = vmatprep.subr.bf16.mxu0 0
    %338 = vmatpush2.bf16.xpose.msra.mxu0 0
    %339 = vmatprep.subr.bf16.mxu0 0
    %340 = vmatpush2.bf16.xpose.msra.mxu0 0
    %341 = vmatprep.subr.bf16.mxu0 0
    %342 = vmatpush2.bf16.xpose.msra.mxu0 0
    %343 = vmatprep.subr.bf16.mxu0 0
    %344 = vmatpush2.bf16.xpose.msra.mxu0 0
    %345 = vmatprep.subr.bf16.mxu0 0
    %346 = vmatpush2.bf16.xpose.msra.mxu0 0
    %347 = vmatprep.subr.bf16.mxu0 0
    %348 = vmatpush2.bf16.xpose.msra.mxu0 0
    %349 = vmatprep.subr.bf16.mxu0 0
    %350 = vmatpush2.bf16.xpose.msra.mxu0 0
    %351 = vmatprep.subr.bf16.mxu0 0
    %352 = vmatpush2.bf16.xpose.msra.mxu0 0
    %353 = vmatprep.mubr.bf16.mxu0 0
    %354 = vmatmul.mubr.bf16.gmra.mxu0 %v316
    %v355 = vpop.f32.mrf.mxu0
    %v356 = vadd.f32 0.0, %v355
    %v357 = vpop.f32.mrf.mxu0
    %v358 = vpop.f32.mrf.mxu0
    %v359 = vpop.f32.mrf.mxu0
    %360 = vdwg.mxu0
    %v362 = vsel %vm130, %v310, 0
    %v365 = vsel %vm130, %v312, 0
    %367 = vmatprep.subr.bf16.mxu0 0
    %368 = vmatpush1.bf16.xpose.msra.mxu0 0
    %369 = vmatprep.subr.bf16.mxu0 0
    %370 = vmatpush1.bf16.xpose.msra.mxu0 0
    %371 = vmatprep.subr.bf16.mxu0 0
    %372 = vmatpush1.bf16.xpose.msra.mxu0 0
    %373 = vmatprep.subr.bf16.mxu0 0
    %374 = vmatpush1.bf16.xpose.msra.mxu0 0
    %375 = vmatprep.subr.bf16.mxu0 0
    %376 = vmatpush1.bf16.xpose.msra.mxu0 0
    %377 = vmatprep.subr.bf16.mxu0 0
    %378 = vmatpush1.bf16.xpose.msra.mxu0 0
    %379 = vmatprep.subr.bf16.mxu0 0
    %380 = vmatpush1.bf16.xpose.msra.mxu0 0
    %381 = vmatprep.subr.bf16.mxu0 0
    %382 = vmatpush1.bf16.xpose.msra.mxu0 %v365
    %383 = vmatprep.subr.bf16.mxu0 0
    %384 = vmatpush2.bf16.xpose.msra.mxu0 0
    %385 = vmatprep.subr.bf16.mxu0 0
    %386 = vmatpush2.bf16.xpose.msra.mxu0 0
    %387 = vmatprep.subr.bf16.mxu0 0
    %388 = vmatpush2.bf16.xpose.msra.mxu0 0
    %389 = vmatprep.subr.bf16.mxu0 0
    %390 = vmatpush2.bf16.xpose.msra.mxu0 0
    %391 = vmatprep.subr.bf16.mxu0 0
    %392 = vmatpush2.bf16.xpose.msra.mxu0 0
    %393 = vmatprep.subr.bf16.mxu0 0
    %394 = vmatpush2.bf16.xpose.msra.mxu0 0
    %395 = vmatprep.subr.bf16.mxu0 0
    %396 = vmatpush2.bf16.xpose.msra.mxu0 0
    %397 = vmatprep.subr.bf16.mxu0 0
    %398 = vmatpush2.bf16.xpose.msra.mxu0 0
    %399 = vmatprep.mubr.bf16.mxu0 0
    %400 = vmatmul.mubr.bf16.gmra.mxu0 %v362
    %v401 = vpop.f32.mrf.mxu0
    %v402 = vadd.f32 0.0, %v401
    %v403 = vpop.f32.mrf.mxu0
    %v404 = vpop.f32.mrf.mxu0
    %v405 = vpop.f32.mrf.mxu0
    %406 = vdwg.mxu0
    %vm407 = vcmask 64512
    %v408 = vsel %vm407, %v356, -inf
    %409 = vmax.xlane.f32.xlu0 %v408
    %v410 = vpop.xlane.xlu0 %409
    %v411 = vsel %vm407, %v402, -inf
    %412 = vmax.xlane.f32.xlu0 %v411
    %v413 = vpop.xlane.xlu0 %412
    %v414 = vsub.f32 %v356, %v410
    %v415 = vsub.f32 %v402, %v413
    %v416 = vmul.f32 %v414, 1.442695
    %v417 = vpow.pop %v416
    %v418 = vmul.f32 %v415, 1.442695
    %v419 = vpow.pop %v418
    %v420 = vsel %vm407, %v417, 0.0
    %421 = vadd.xlane.f32.xlu0 %v420
    %v422 = vpop.xlane.xlu0 %421
    %v423 = vsel %vm407, %v419, 0.0
    %424 = vadd.xlane.f32.xlu0 %v423
    %v425 = vpop.xlane.xlu0 %424
    %v426 = vrcp.pop %v422
    %v427 = vrcp.pop %v425
    %v428 = vmul.f32 %v417, %v426
    %v429 = vmul.f32 %v419, %v427
    %v430 = vpack.c.bf16 %v428, %v428
    %v431 = vpack.c.bf16 %v429, %v429
    %v433 = vsel %vm407, %v430, 0
    %vm435 = vcmask 1043456
    %v437 = vsel %vm435, %v313, 0
    %439 = vmatprep.subr.bf16.mxu0 0
    %440 = vmatpush1.bf16.msra.mxu0 0
    %441 = vmatprep.subr.bf16.mxu0 0
    %442 = vmatpush1.bf16.msra.mxu0 0
    %443 = vmatprep.subr.bf16.mxu0 0
    %444 = vmatpush1.bf16.msra.mxu0 0
    %445 = vmatprep.subr.bf16.mxu0 0
    %446 = vmatpush1.bf16.msra.mxu0 0
    %447 = vmatprep.subr.bf16.mxu0 0
    %448 = vmatpush1.bf16.msra.mxu0 0
    %449 = vmatprep.subr.bf16.mxu0 0
    %450 = vmatpush1.bf16.msra.mxu0 0
    %451 = vmatprep.subr.bf16.mxu0 0
    %452 = vmatpush1.bf16.msra.mxu0 0
    %453 = vmatprep.subr.bf16.mxu0 0
    %454 = vmatpush1.bf16.msra.mxu0 %v437
    %455 = vmatprep.subr.bf16.mxu0 0
    %456 = vmatpush2.bf16.msra.mxu0 0
    %457 = vmatprep.subr.bf16.mxu0 0
    %458 = vmatpush2.bf16.msra.mxu0 0
    %459 = vmatprep.subr.bf16.mxu0 0
    %460 = vmatpush2.bf16.msra.mxu0 0
    %461 = vmatprep.subr.bf16.mxu0 0
    %462 = vmatpush2.bf16.msra.mxu0 0
    %463 = vmatprep.subr.bf16.mxu0 0
    %464 = vmatpush2.bf16.msra.mxu0 0
    %465 = vmatprep.subr.bf16.mxu0 0
    %466 = vmatpush2.bf16.msra.mxu0 0
    %467 = vmatprep.subr.bf16.mxu0 0
    %468 = vmatpush2.bf16.msra.mxu0 0
    %469 = vmatprep.subr.bf16.mxu0 0
    %470 = vmatpush2.bf16.msra.mxu0 0
    %471 = vmatprep.mubr.bf16.mxu0 0
    %472 = vmatmul.mubr.bf16.gmra.mxu0 %v433
    %v473 = vpop.f32.mrf.mxu0
    %v474 = vadd.f32 0.0, %v473
    %v475 = vpop.f32.mrf.mxu0
    %v476 = vpop.f32.mrf.mxu0
    %v477 = vpop.f32.mrf.mxu0
    %478 = vdwg.mxu0
    %v480 = vsel %vm407, %v431, 0
    %v483 = vsel %vm435, %v314, 0
    %485 = vmatprep.subr.bf16.mxu0 0
    %486 = vmatpush1.bf16.msra.mxu0 0
    %487 = vmatprep.subr.bf16.mxu0 0
    %488 = vmatpush1.bf16.msra.mxu0 0
    %489 = vmatprep.subr.bf16.mxu0 0
    %490 = vmatpush1.bf16.msra.mxu0 0
    %491 = vmatprep.subr.bf16.mxu0 0
    %492 = vmatpush1.bf16.msra.mxu0 0
    %493 = vmatprep.subr.bf16.mxu0 0
    %494 = vmatpush1.bf16.msra.mxu0 0
    %495 = vmatprep.subr.bf16.mxu0 0
    %496 = vmatpush1.bf16.msra.mxu0 0
    %497 = vmatprep.subr.bf16.mxu0 0
    %498 = vmatpush1.bf16.msra.mxu0 0
    %499 = vmatprep.subr.bf16.mxu0 0
    %500 = vmatpush1.bf16.msra.mxu0 %v483
    %501 = vmatprep.subr.bf16.mxu0 0
    %502 = vmatpush2.bf16.msra.mxu0 0
    %503 = vmatprep.subr.bf16.mxu0 0
    %504 = vmatpush2.bf16.msra.mxu0 0
    %505 = vmatprep.subr.bf16.mxu0 0
    %506 = vmatpush2.bf16.msra.mxu0 0
    %507 = vmatprep.subr.bf16.mxu0 0
    %508 = vmatpush2.bf16.msra.mxu0 0
    %509 = vmatprep.subr.bf16.mxu0 0
    %510 = vmatpush2.bf16.msra.mxu0 0
    %511 = vmatprep.subr.bf16.mxu0 0
    %512 = vmatpush2.bf16.msra.mxu0 0
    %513 = vmatprep.subr.bf16.mxu0 0
    %514 = vmatpush2.bf16.msra.mxu0 0
    %515 = vmatprep.subr.bf16.mxu0 0
    %516 = vmatpush2.bf16.msra.mxu0 0
    %517 = vmatprep.mubr.bf16.mxu0 0
    %518 = vmatmul.mubr.bf16.gmra.mxu0 %v480
    %v519 = vpop.f32.mrf.mxu0
    %v520 = vadd.f32 0.0, %v519
    %v521 = vpop.f32.mrf.mxu0
    %v522 = vpop.f32.mrf.mxu0
    %v523 = vpop.f32.mrf.mxu0
    %524 = vdwg.mxu0
    %525 = vst.msk [vmem:[#allocation13] sm:$0xff] %vm130, %v474
    %526 = vst.msk [vmem:[#allocation13 + $0x8] sm:$0xff] %vm130, %v520
    // Predicated region
    $region50: #{tpu_custom_call.1} parent=1 // pred_check
      _
    $region51: #{tpu_custom_call.1} parent=1 // pred_check_branch
      %528 = sbr.rel (0) target = $region53
    $region52: #{tpu_custom_call.1} parent=1 // pred_region
      %s530 = ssub.s32 256, 256
      %531 = vsyncadd [#allocation4], %s530
      %s532 = sshll.u32 [#allocation13], 4
      %s533 = int_to_ptr.vmem [resolvable:$true] %s532
      %538 = dma.vmem_to_hbm [thread:$0]  %s533, 256, %s6, [#allocation4], 128, 128, 8
    $region53: #{tpu_custom_call.1} parent=1 // pred_fallthru
      _
    // Predicated region
    $region54: #{tpu_custom_call.1} parent=1 // pred_check
      _
    $region55: #{tpu_custom_call.1} parent=1 // pred_check_branch
      %540 = sbr.rel (0) target = $region57
    $region56: #{tpu_custom_call.1} parent=1 // pred_region
      %541 = dma.done [#allocation4], 256
    $region57: #{tpu_custom_call.1} parent=1 // pred_fallthru
      _
    %542 = vsyncpa [#allocation3], 1
    %543 = vsyncpa [#allocation6], 1
    %544 = vsyncpa [#allocation9], 1
    %545 = vsyncpa [#allocation12], 1
    %546 = vsyncpa [#allocation4], 1

</llo_original>
